<compile_context>
chip_gen: v7x
topology: tpu7x:2x2x1
jax: 0.10.0
libtpu: 0.0.40
codegen_flags: <defaults>
</compile_context>

<pallas_src>
import functools

import jax
import jax.numpy as jnp
from jax.experimental import pallas as pl
from jax.experimental.pallas import tpu as pltpu


def _round_up(x, m):
    return ((x + m - 1) // m) * m


def _num_parallel_cores():
    """TensorCores a 'parallel' grid axis can shard across on this chip."""
    try:
        kind = jax.devices()[0].device_kind.lower()
    except Exception:
        return 1
    return 2 if any(tag in kind for tag in ("v7", "v5p", "v4")) else 1


def _vmem_cap_bytes():
    """Physical per-core VMEM; conservative fallback (v7x = 64 MiB)."""
    try:
        return int(pltpu.get_tpu_info().vmem_capacity_bytes)
    except Exception:
        return 64 * 1024 * 1024


def _lstm_kernel(
    x_ref,        # (Tc, Bb, E)   embedded inputs for this (batch, time) block
    wx_ref,       # (E, 4Hp)      fused input->gate weights (mxu dtype)
    wh_ref,       # (Hp, 4Hp)     fused hidden->gate weights (mxu dtype)
    b_ref,        # (1, 4Hp)      fused gate bias (f32)
    why_ref,      # (Hp, Op)      output projection (mxu dtype)
    by_ref,       # (1, Op)       output bias (f32)
    y_ref,        # (Tc, Bb, Op)  output (f32)
    xg_scr,       # (Tc*Bb, 4Hp)  mxu-dtype scratch: precomputed x-projections
    h_hist_scr,   # (Tc*Bb, Hp)   mxu-dtype scratch: h_t history for this chunk
    h_carry,      # (Bb, Hp) f32  persistent h carry across time chunks
    c_carry,      # (Bb, Hp) f32  persistent c carry across time chunks
):
    Tc, Bb, E = x_ref.shape
    Hp = wh_ref.shape[0]
    Op = why_ref.shape[1]

    # Reset the recurrent carry at the first time chunk of every batch block.
    @pl.when(pl.program_id(1) == 0)
    def _():
        h_carry[...] = jnp.zeros((Bb, Hp), jnp.float32)
        c_carry[...] = jnp.zeros((Bb, Hp), jnp.float32)

    # ---- 1) Input projection + bias for the whole chunk: one MXU matmul. ----
    x2 = x_ref[...].reshape(Tc * Bb, E)
    xg = jnp.dot(x2, wx_ref[...], preferred_element_type=jnp.float32) + b_ref[...]
    xg_scr[...] = xg.astype(xg_scr.dtype)

    wh = wh_ref[...]

    # ---- 2) Serial recurrence over the chunk. Gate math / c state stay f32;
    #         Hp is a multiple of 128 so each gate slice is a whole-vreg view.
    def step(t, carry):
        h, c = carry                                      # (Bb, Hp) f32
        row = pl.multiple_of(t * Bb, Bb)
        gates = xg_scr[pl.ds(row, Bb), :].astype(jnp.float32) + jnp.dot(
            h.astype(wh.dtype), wh, preferred_element_type=jnp.float32
        )                                                 # (Bb, 4Hp) f32
        # TODO(synk): on v6e/v7x the EUP supports bf16 — bf16 sigmoid/tanh would
        # relieve the transcendental slot on the per-step critical path.
        i_t = jax.nn.sigmoid(gates[:, 0 * Hp:1 * Hp])
        f_t = jax.nn.sigmoid(gates[:, 1 * Hp:2 * Hp])
        o_t = jax.nn.sigmoid(gates[:, 2 * Hp:3 * Hp])
        g_t = jnp.tanh(gates[:, 3 * Hp:4 * Hp])
        c_new = f_t * c + i_t * g_t
        h_new = o_t * jnp.tanh(c_new)
        h_hist_scr[pl.ds(row, Bb), :] = h_new.astype(h_hist_scr.dtype)
        return (h_new, c_new)

    carry0 = (h_carry[...], c_carry[...])
    h_f, c_f = jax.lax.fori_loop(0, Tc, step, carry0,
                                 unroll=(True if Tc <= 32 else 4))
    h_carry[...] = h_f
    c_carry[...] = c_f

    # ---- 3) Output projection for the whole chunk: one MXU matmul,
    #         lane-dense (Op multiple of 128) unmasked stores. ----
    y2 = jnp.dot(h_hist_scr[...], why_ref[...],
                 preferred_element_type=jnp.float32) + by_ref[...]
    y_ref[...] = y2.reshape(Tc, Bb, Op)


def pack_lstm_params(params, mxu_dtype=jnp.bfloat16):
    """Fuse the four gates (order i, f, o, c) and pad H -> Hp, O -> Op.

    Hp is a multiple of 128 so every gate occupies whole lane tiles. Zero
    padding is numerically inert: padded hidden lanes see zero pre-activations,
    so c stays 0 and h stays 0 for them, and the padded W_hy rows are zero.
    """
    H = params["W_hi"].shape[0]
    O = params["W_hy"].shape[1]
    Hp = _round_up(H, 128)      # whole-vreg gate slices on the serial path
    Op = _round_up(O, 128)      # lane-dense output stores

    def pad_cols(w):            # (X, H) -> (X, Hp)
        return jnp.pad(w, ((0, 0), (0, Hp - H)))

    def pad_both(w):            # (H, H) -> (Hp, Hp)
        return jnp.pad(w, ((0, Hp - H), (0, Hp - H)))

    wx = jnp.concatenate(
        [pad_cols(params[k]) for k in ("W_xi", "W_xf", "W_xo", "W_xc")], axis=1)
    wh = jnp.concatenate(
        [pad_both(params[k]) for k in ("W_hi", "W_hf", "W_ho", "W_hc")], axis=1)
    b = jnp.concatenate(
        [jnp.pad(params[k], (0, Hp - H)) for k in ("b_i", "b_f", "b_o", "b_c")])
    why = jnp.pad(params["W_hy"], ((0, Hp - H), (0, Op - O)))
    by = jnp.pad(params["b_y"], (0, Op - O))
    return (wx.astype(mxu_dtype),
            wh.astype(mxu_dtype),
            b.reshape(1, 4 * Hp).astype(jnp.float32),
            why.astype(mxu_dtype),
            by.reshape(1, Op).astype(jnp.float32),
            Hp, Op)


def lstm_layer_pallas(x_tbe, params, mxu_dtype=jnp.bfloat16,
                      time_chunk=None, batch_block=None):
    """x_tbe: [T, B, E] -> y: [T, B, O] float32 (matches the PyTorch LSTMLayer)."""
    T, B, E = x_tbe.shape
    O = params["W_hy"].shape[1]
    wx, wh, b, why, by, Hp, Op = pack_lstm_params(params, mxu_dtype)

    itemsize = jnp.dtype(mxu_dtype).itemsize
    pack = max(8, 32 // max(itemsize, 1))          # 8 f32, 16 bf16, 32 int8/fp8
    B_pad = _round_up(B, pack)

    # Batch blocks: one fat block on single-TC chips (v5e/v6e); split across
    # TensorCores only where a 'parallel' axis actually buys parallelism.
    n_tc = _num_parallel_cores()
    if batch_block is not None:
        b_block = _round_up(min(int(batch_block), B_pad), pack)
    elif n_tc > 1 and B_pad >= n_tc * pack:
        b_block = _round_up(-(-B_pad // n_tc), pack)
    else:
        b_block = B_pad
    B_pad = _round_up(B_pad, b_block)
    n_blocks = B_pad // b_block

    # Time chunk sized so per-chunk VMEM (weights + scratch + double-buffered
    # x/y blocks) stays well under the default scoped limit on every chip.
    weight_bytes = (2 * (E * 4 * Hp + Hp * 4 * Hp + Hp * Op) * itemsize
                    + 4 * (4 * Hp + Op) * 4)
    carry_bytes = 2 * b_block * Hp * 4
    per_step_bytes = b_block * (2 * E * itemsize + 2 * Op * 4
                                + 4 * Hp * itemsize + Hp * itemsize)
    budget = 24 * 1024 * 1024
    if time_chunk is not None:
        Tc = max(1, min(int(time_chunk), T))
    else:
        Tc = int(max(1, min(T, (budget - weight_bytes - carry_bytes)
                            // max(per_step_bytes, 1))))
    n_chunks = -(-T // Tc)
    Tc = -(-T // n_chunks)                         # balance chunk sizes
    T_pad = n_chunks * Tc

    x = jnp.pad(x_tbe, ((0, T_pad - T), (0, B_pad - B), (0, 0))).astype(mxu_dtype)

    # Generation-aware scoped-VMEM limit (rarely needed now that T is chunked).
    est = weight_bytes + carry_bytes + Tc * per_step_bytes
    vmem_limit = None
    if est > 30 * 1024 * 1024:
        cap = _vmem_cap_bytes()
        vmem_limit = max(32 * 1024 * 1024,
                         min(int(est * 5 // 4), cap - 8 * 1024 * 1024))

    out = pl.pallas_call(
        _lstm_kernel,
        out_shape=jax.ShapeDtypeStruct((T_pad, B_pad, Op), jnp.float32),
        grid_spec=pltpu.PrefetchScalarGridSpec(
            num_scalar_prefetch=0,
            grid=(n_blocks, n_chunks),             # (parallel batch, serial time)
            in_specs=[
                pl.BlockSpec((Tc, b_block, E), lambda i, t: (t, i, 0)),
                # TODO(synk): single-buffer the grid-invariant weight blocks
                # (pipeline_mode=pl.Buffered(1)) to save ~half the weight VMEM.
                pl.BlockSpec((E, 4 * Hp), lambda i, t: (0, 0)),
                pl.BlockSpec((Hp, 4 * Hp), lambda i, t: (0, 0)),
                pl.BlockSpec((1, 4 * Hp), lambda i, t: (0, 0)),
                pl.BlockSpec((Hp, Op), lambda i, t: (0, 0)),
                pl.BlockSpec((1, Op), lambda i, t: (0, 0)),
            ],
            out_specs=pl.BlockSpec((Tc, b_block, Op), lambda i, t: (t, i, 0)),
            scratch_shapes=[
                pltpu.VMEM((Tc * b_block, 4 * Hp), mxu_dtype),   # x-projection slab
                pltpu.VMEM((Tc * b_block, Hp), mxu_dtype),       # h_t history
                pltpu.VMEM((b_block, Hp), jnp.float32),          # h carry
                pltpu.VMEM((b_block, Hp), jnp.float32),          # c carry
            ],
        ),
        compiler_params=pltpu.CompilerParams(
            dimension_semantics=("parallel", "arbitrary"),
            vmem_limit_bytes=vmem_limit,
        ),
    )(x, wx, wh, b, why, by)

    return out[:T, :B, :O]


def lstm_forward(token_ids, embedding_table, params, mxu_dtype=jnp.bfloat16,
                 time_chunk=None, batch_block=None):
    """Full LSTM module forward: token ids [B, T] int32 -> [B, T, O] float32."""
    # Embedding gather directly in time-major layout (no extra transpose pass).
    # TODO(synk): fuse the gather into the kernel (scalar-prefetch token ids)
    # when T*B*E dominates input traffic.
    x_tbe = jnp.take(embedding_table, token_ids.T, axis=0)   # [T, B, E]
    y_tbo = lstm_layer_pallas(x_tbe, params, mxu_dtype=mxu_dtype,
                              time_chunk=time_chunk, batch_block=batch_block)
    # Slice (above) + transpose fuse into one XLA copy under jit.
    # TODO(synk): emit batch-major [B, T, O] directly from the kernel to drop it.
    return jnp.transpose(y_tbo, (1, 0, 2))                   # [B, T, O]


def _init_params(key, vocab_size, E, H, O):
    ks = jax.random.split(key, 8)
    s_xh = (2.0 / (E + H)) ** 0.5
    s_hh = (2.0 / (E + H)) ** 0.5
    s_hy = (2.0 / (H + O)) ** 0.5
    params = {
        "W_xi": jax.random.normal(ks[0], (E, H), jnp.float32) * s_xh,
        "W_hi": jax.random.normal(ks[1], (H, H), jnp.float32) * s_hh,
        "b_i": jnp.zeros((H,), jnp.float32),
        "W_xf": jax.random.normal(ks[2], (E, H), jnp.float32) * s_xh,
        "W_hf": jax.random.normal(ks[3], (H, H), jnp.float32) * s_hh,
        "b_f": jnp.zeros((H,), jnp.float32),
        "W_xo": jax.random.normal(ks[4], (E, H), jnp.float32) * s_xh,
        "W_ho": jax.random.normal(ks[5], (H, H), jnp.float32) * s_hh,
        "b_o": jnp.zeros((H,), jnp.float32),
        "W_xc": jax.random.normal(ks[6], (E, H), jnp.float32) * s_xh,
        "W_hc": jax.random.normal(ks[7], (H, H), jnp.float32) * s_hh,
        "b_c": jnp.zeros((H,), jnp.float32),
    }
    k_hy, k_emb = jax.random.split(jax.random.fold_in(key, 123))
    params["W_hy"] = jax.random.normal(k_hy, (H, O), jnp.float32) * s_hy
    params["b_y"] = jnp.zeros((O,), jnp.float32)
    embedding = jax.random.normal(k_emb, (vocab_size, E), jnp.float32)
    return embedding, params


def _reference_forward(token_ids, embedding_table, params):
    """Pure-JAX reference replicating the PyTorch forward exactly (f32)."""
    x = jnp.take(embedding_table, token_ids, axis=0)  # [B, T, E]
    B, T, E = x.shape
    H = params["W_hi"].shape[0]

    def step(carry, x_t):
        h, c = carry
        i_t = jax.nn.sigmoid(x_t @ params["W_xi"] + h @ params["W_hi"] + params["b_i"])
        f_t = jax.nn.sigmoid(x_t @ params["W_xf"] + h @ params["W_hf"] + params["b_f"])
        o_t = jax.nn.sigmoid(x_t @ params["W_xo"] + h @ params["W_ho"] + params["b_o"])
        g_t = jnp.tanh(x_t @ params["W_xc"] + h @ params["W_hc"] + params["b_c"])
        c_new = f_t * c + i_t * g_t
        h_new = o_t * jnp.tanh(c_new)
        y_t = h_new @ params["W_hy"] + params["b_y"]
        return (h_new, c_new), y_t

    init = (jnp.zeros((B, H), jnp.float32), jnp.zeros((B, H), jnp.float32))
    _, ys = jax.lax.scan(step, init, jnp.transpose(x, (1, 0, 2)))
    return jnp.transpose(ys, (1, 0, 2))


if __name__ == "__main__":
    VOCAB = 50
    B, T, E, H, O = 4, 8, 16, 32, 8

    key = jax.random.PRNGKey(0)
    k_tok, k_par = jax.random.split(key)

    embedding, params = _init_params(k_par, VOCAB, E, H, O)
    token_ids = jax.random.randint(k_tok, (B, T), 0, VOCAB, dtype=jnp.int32)

    ref = _reference_forward(token_ids, embedding, params)

    # 1) f32 MXU operands: tight check against the pure-JAX reference.
    fwd_f32 = jax.jit(functools.partial(lstm_forward, mxu_dtype=jnp.float32))
    out_f32 = jax.block_until_ready(fwd_f32(token_ids, embedding, params))
    assert out_f32.shape == (B, T, O), out_f32.shape
    err_f32 = float(jnp.max(jnp.abs(out_f32 - ref)))
    assert jnp.allclose(out_f32, ref, atol=1e-4, rtol=1e-4), err_f32

    # 2) bf16 MXU operands (f32 accumulation, f32 gate math): fast path.
    fwd_bf16 = jax.jit(functools.partial(lstm_forward, mxu_dtype=jnp.bfloat16))
    out_bf16 = jax.block_until_ready(fwd_bf16(token_ids, embedding, params))
    assert out_bf16.shape == (B, T, O), out_bf16.shape
    err_bf16 = float(jnp.max(jnp.abs(out_bf16 - ref)))
    assert jnp.allclose(out_bf16, ref, atol=7.5e-2, rtol=7.5e-2), err_bf16

    # 3) Multi batch-block + multi time-chunk path (carry reset across blocks,
    #    T padding, chunked pipelining) with a tight f32 check.
    B2 = 12
    token_ids2 = jax.random.randint(jax.random.fold_in(k_tok, 7), (B2, T), 0,
                                    VOCAB, dtype=jnp.int32)
    ref2 = _reference_forward(token_ids2, embedding, params)
    fwd_chunked = jax.jit(functools.partial(
        lstm_forward, mxu_dtype=jnp.float32, time_chunk=3, batch_block=8))
    out2 = jax.block_until_ready(fwd_chunked(token_ids2, embedding, params))
    assert out2.shape == (B2, T, O), out2.shape
    err2 = float(jnp.max(jnp.abs(out2 - ref2)))
    assert jnp.allclose(out2, ref2, atol=1e-4, rtol=1e-4), err2

    print("KERNEL_OK")
</pallas_src>

<mosaic_0001>
module attributes {stable_mosaic.version = 11 : i64} {
  func.func @_lstm_kernel(%arg0: i32, %arg1: i32, %arg2: memref<8x8x16xf32, #tpu.memory_space<vmem>>, %arg3: memref<16x512xf32, #tpu.memory_space<vmem>>, %arg4: memref<128x512xf32, #tpu.memory_space<vmem>>, %arg5: memref<1x512xf32, #tpu.memory_space<vmem>>, %arg6: memref<128x128xf32, #tpu.memory_space<vmem>>, %arg7: memref<1x128xf32, #tpu.memory_space<vmem>>, %arg8: memref<8x8x128xf32, #tpu.memory_space<vmem>>, %arg9: memref<64x512xf32, #tpu.memory_space<vmem>>, %arg10: memref<64x128xf32, #tpu.memory_space<vmem>>, %arg11: memref<8x128xf32, #tpu.memory_space<vmem>>, %arg12: memref<8x128xf32, #tpu.memory_space<vmem>>) attributes {dimension_semantics = [#tpu.dimension_semantics<parallel>, #tpu.dimension_semantics<arbitrary>], iteration_bounds = array<i64: 1, 1>, scalar_prefetch = 0 : i64, scratch_operands = 4 : i64, tpu.core_type = #tpu.core_type<tc>, window_params = [{transform_indices = @transform_0, window_bounds = array<i64: 8, 8, 16>}, {pipeline_mode = #tpu.pipeline_mode<synchronous>, transform_indices = @transform_1, window_bounds = array<i64: 16, 512>}, {pipeline_mode = #tpu.pipeline_mode<synchronous>, transform_indices = @transform_2, window_bounds = array<i64: 128, 512>}, {pipeline_mode = #tpu.pipeline_mode<synchronous>, transform_indices = @transform_3, window_bounds = array<i64: 1, 512>}, {pipeline_mode = #tpu.pipeline_mode<synchronous>, transform_indices = @transform_4, window_bounds = array<i64: 128, 128>}, {pipeline_mode = #tpu.pipeline_mode<synchronous>, transform_indices = @transform_5, window_bounds = array<i64: 1, 128>}, {transform_indices = @transform_6, window_bounds = array<i64: 8, 8, 128>}]} {
    %c0_i32 = arith.constant 0 : i32
    %0 = arith.cmpi eq, %arg1, %c0_i32 : i32
    %1 = arith.extui %0 : i1 to i32
    %c0_i32_0 = arith.constant 0 : i32
    %2 = arith.cmpi ne, %1, %c0_i32_0 : i32
    scf.if %2 {
      %cst_86 = arith.constant 0.000000e+00 : f32
      %288 = vector.broadcast %cst_86 : f32 to vector<8x128xf32>
      %c0_87 = arith.constant 0 : index
      %c0_88 = arith.constant 0 : index
      %289 = vector.load %arg11[%c0_87, %c0_88] : memref<8x128xf32, #tpu.memory_space<vmem>>, vector<8x128xf32>
      tpu.vector_store %arg11[%c0_87, %c0_88], %288 {strides = array<i32>} : memref<8x128xf32, #tpu.memory_space<vmem>>, vector<8x128xf32>,
      %cst_89 = arith.constant 0.000000e+00 : f32
      %290 = vector.broadcast %cst_89 : f32 to vector<8x128xf32>
      %c0_90 = arith.constant 0 : index
      %c0_91 = arith.constant 0 : index
      %291 = vector.load %arg12[%c0_90, %c0_91] : memref<8x128xf32, #tpu.memory_space<vmem>>, vector<8x128xf32>
      tpu.vector_store %arg12[%c0_90, %c0_91], %290 {strides = array<i32>} : memref<8x128xf32, #tpu.memory_space<vmem>>, vector<8x128xf32>,
    } else {
    }
    %c0 = arith.constant 0 : index
    %c0_1 = arith.constant 0 : index
    %c0_2 = arith.constant 0 : index
    %3 = vector.load %arg2[%c0, %c0_1, %c0_2] : memref<8x8x16xf32, #tpu.memory_space<vmem>>, vector<8x8x16xf32>
    %4 = vector.shape_cast %3 : vector<8x8x16xf32> to vector<64x16xf32>
    %c0_3 = arith.constant 0 : index
    %c0_4 = arith.constant 0 : index
    %5 = vector.load %arg3[%c0_3, %c0_4] : memref<16x512xf32, #tpu.memory_space<vmem>>, vector<16x512xf32>
    %cst = arith.constant dense<0.000000e+00> : vector<64x512xf32>
    %6 = tpu.matmul %4, %5, %cst {dimension_numbers = #tpu.dot_dimension_numbers<[1], [0], [0], [1], [0, 0, 1, 1], [], []>} : vector<64x16xf32>, vector<16x512xf32>, vector<64x512xf32> -> vector<64x512xf32>
    %c0_5 = arith.constant 0 : index
    %c0_6 = arith.constant 0 : index
    %7 = vector.load %arg5[%c0_5, %c0_6] : memref<1x512xf32, #tpu.memory_space<vmem>>, vector<1x512xf32>
    %8 = vector.broadcast %7 : vector<1x512xf32> to vector<64x512xf32>
    %9 = arith.addf %6, %8 : vector<64x512xf32>
    %c0_7 = arith.constant 0 : index
    %c0_8 = arith.constant 0 : index
    %10 = vector.load %arg9[%c0_7, %c0_8] : memref<64x512xf32, #tpu.memory_space<vmem>>, vector<64x512xf32>
    tpu.vector_store %arg9[%c0_7, %c0_8], %9 {strides = array<i32>} : memref<64x512xf32, #tpu.memory_space<vmem>>, vector<64x512xf32>,
    %c0_9 = arith.constant 0 : index
    %c0_10 = arith.constant 0 : index
    %11 = vector.load %arg4[%c0_9, %c0_10] : memref<128x512xf32, #tpu.memory_space<vmem>>, vector<128x512xf32>
    %c0_11 = arith.constant 0 : index
    %c0_12 = arith.constant 0 : index
    %12 = vector.load %arg11[%c0_11, %c0_12] : memref<8x128xf32, #tpu.memory_space<vmem>>, vector<8x128xf32>
    %c0_13 = arith.constant 0 : index
    %c0_14 = arith.constant 0 : index
    %13 = vector.load %arg12[%c0_13, %c0_14] : memref<8x128xf32, #tpu.memory_space<vmem>>, vector<8x128xf32>
    %c0_i32_15 = arith.constant 0 : i32
    %c8_i32 = arith.constant 8 : i32
    %14 = arith.muli %c0_i32_15, %c8_i32 : i32
    %15 = tpu.assume_multiple %14, 8 : i32
    %16 = arith.index_cast %15 : i32 to index
    %c0_16 = arith.constant 0 : index
    %17 = vector.load %arg9[%16, %c0_16] : memref<64x512xf32, #tpu.memory_space<vmem>>, vector<8x512xf32>
    %cst_17 = arith.constant dense<0.000000e+00> : vector<8x512xf32>
    %18 = tpu.matmul %12, %11, %cst_17 {dimension_numbers = #tpu.dot_dimension_numbers<[1], [0], [0], [1], [0, 0, 1, 1], [], []>} : vector<8x128xf32>, vector<128x512xf32>, vector<8x512xf32> -> vector<8x512xf32>
    %19 = arith.addf %17, %18 : vector<8x512xf32>
    %20 = vector.extract_strided_slice %19 {offsets = [0, 0], sizes = [8, 128], strides = [1, 1]} : vector<8x512xf32> to vector<8x128xf32>
    %21 = arith.negf %20 : vector<8x128xf32>
    %22 = math.exp %21 : vector<8x128xf32>
    %cst_18 = arith.constant 1.000000e+00 : f32
    %23 = vector.broadcast %cst_18 : f32 to vector<8x128xf32>
    %24 = arith.addf %23, %22 : vector<8x128xf32>
    %25 = arith.divf %23, %24 : vector<8x128xf32>
    %26 = vector.extract_strided_slice %19 {offsets = [0, 128], sizes = [8, 128], strides = [1, 1]} : vector<8x512xf32> to vector<8x128xf32>
    %27 = arith.negf %26 : vector<8x128xf32>
    %28 = math.exp %27 : vector<8x128xf32>
    %cst_19 = arith.constant 1.000000e+00 : f32
    %29 = vector.broadcast %cst_19 : f32 to vector<8x128xf32>
    %30 = arith.addf %29, %28 : vector<8x128xf32>
    %31 = arith.divf %29, %30 : vector<8x128xf32>
    %32 = vector.extract_strided_slice %19 {offsets = [0, 256], sizes = [8, 128], strides = [1, 1]} : vector<8x512xf32> to vector<8x128xf32>
    %33 = arith.negf %32 : vector<8x128xf32>
    %34 = math.exp %33 : vector<8x128xf32>
    %cst_20 = arith.constant 1.000000e+00 : f32
    %35 = vector.broadcast %cst_20 : f32 to vector<8x128xf32>
    %36 = arith.addf %35, %34 : vector<8x128xf32>
    %37 = arith.divf %35, %36 : vector<8x128xf32>
    %38 = vector.extract_strided_slice %19 {offsets = [0, 384], sizes = [8, 128], strides = [1, 1]} : vector<8x512xf32> to vector<8x128xf32>
    %39 = math.tanh %38 : vector<8x128xf32>
    %40 = arith.mulf %31, %13 : vector<8x128xf32>
    %41 = arith.mulf %25, %39 : vector<8x128xf32>
    %42 = arith.addf %40, %41 : vector<8x128xf32>
    %43 = math.tanh %42 : vector<8x128xf32>
    %44 = arith.mulf %37, %43 : vector<8x128xf32>
    %45 = arith.index_cast %15 : i32 to index
    %c0_21 = arith.constant 0 : index
    %46 = vector.load %arg10[%45, %c0_21] : memref<64x128xf32, #tpu.memory_space<vmem>>, vector<8x128xf32>
    tpu.vector_store %arg10[%45, %c0_21], %44 {strides = array<i32>} : memref<64x128xf32, #tpu.memory_space<vmem>>, vector<8x128xf32>,
    %c1_i32 = arith.constant 1 : i32
    %c8_i32_22 = arith.constant 8 : i32
    %47 = arith.muli %c1_i32, %c8_i32_22 : i32
    %48 = tpu.assume_multiple %47, 8 : i32
    %49 = arith.index_cast %48 : i32 to index
    %c0_23 = arith.constant 0 : index
    %50 = vector.load %arg9[%49, %c0_23] : memref<64x512xf32, #tpu.memory_space<vmem>>, vector<8x512xf32>
    %cst_24 = arith.constant dense<0.000000e+00> : vector<8x512xf32>
    %51 = tpu.matmul %44, %11, %cst_24 {dimension_numbers = #tpu.dot_dimension_numbers<[1], [0], [0], [1], [0, 0, 1, 1], [], []>} : vector<8x128xf32>, vector<128x512xf32>, vector<8x512xf32> -> vector<8x512xf32>
    %52 = arith.addf %50, %51 : vector<8x512xf32>
    %53 = vector.extract_strided_slice %52 {offsets = [0, 0], sizes = [8, 128], strides = [1, 1]} : vector<8x512xf32> to vector<8x128xf32>
    %54 = arith.negf %53 : vector<8x128xf32>
    %55 = math.exp %54 : vector<8x128xf32>
    %cst_25 = arith.constant 1.000000e+00 : f32
    %56 = vector.broadcast %cst_25 : f32 to vector<8x128xf32>
    %57 = arith.addf %56, %55 : vector<8x128xf32>
    %58 = arith.divf %56, %57 : vector<8x128xf32>
    %59 = vector.extract_strided_slice %52 {offsets = [0, 128], sizes = [8, 128], strides = [1, 1]} : vector<8x512xf32> to vector<8x128xf32>
    %60 = arith.negf %59 : vector<8x128xf32>
    %61 = math.exp %60 : vector<8x128xf32>
    %cst_26 = arith.constant 1.000000e+00 : f32
    %62 = vector.broadcast %cst_26 : f32 to vector<8x128xf32>
    %63 = arith.addf %62, %61 : vector<8x128xf32>
    %64 = arith.divf %62, %63 : vector<8x128xf32>
    %65 = vector.extract_strided_slice %52 {offsets = [0, 256], sizes = [8, 128], strides = [1, 1]} : vector<8x512xf32> to vector<8x128xf32>
    %66 = arith.negf %65 : vector<8x128xf32>
    %67 = math.exp %66 : vector<8x128xf32>
    %cst_27 = arith.constant 1.000000e+00 : f32
    %68 = vector.broadcast %cst_27 : f32 to vector<8x128xf32>
    %69 = arith.addf %68, %67 : vector<8x128xf32>
    %70 = arith.divf %68, %69 : vector<8x128xf32>
    %71 = vector.extract_strided_slice %52 {offsets = [0, 384], sizes = [8, 128], strides = [1, 1]} : vector<8x512xf32> to vector<8x128xf32>
    %72 = math.tanh %71 : vector<8x128xf32>
    %73 = arith.mulf %64, %42 : vector<8x128xf32>
    %74 = arith.mulf %58, %72 : vector<8x128xf32>
    %75 = arith.addf %73, %74 : vector<8x128xf32>
    %76 = math.tanh %75 : vector<8x128xf32>
    %77 = arith.mulf %70, %76 : vector<8x128xf32>
    %78 = arith.index_cast %48 : i32 to index
    %c0_28 = arith.constant 0 : index
    %79 = vector.load %arg10[%78, %c0_28] : memref<64x128xf32, #tpu.memory_space<vmem>>, vector<8x128xf32>
    tpu.vector_store %arg10[%78, %c0_28], %77 {strides = array<i32>} : memref<64x128xf32, #tpu.memory_space<vmem>>, vector<8x128xf32>,
    %c2_i32 = arith.constant 2 : i32
    %c8_i32_29 = arith.constant 8 : i32
    %80 = arith.muli %c2_i32, %c8_i32_29 : i32
    %81 = tpu.assume_multiple %80, 8 : i32
    %82 = arith.index_cast %81 : i32 to index
    %c0_30 = arith.constant 0 : index
    %83 = vector.load %arg9[%82, %c0_30] : memref<64x512xf32, #tpu.memory_space<vmem>>, vector<8x512xf32>
    %cst_31 = arith.constant dense<0.000000e+00> : vector<8x512xf32>
    %84 = tpu.matmul %77, %11, %cst_31 {dimension_numbers = #tpu.dot_dimension_numbers<[1], [0], [0], [1], [0, 0, 1, 1], [], []>} : vector<8x128xf32>, vector<128x512xf32>, vector<8x512xf32> -> vector<8x512xf32>
    %85 = arith.addf %83, %84 : vector<8x512xf32>
    %86 = vector.extract_strided_slice %85 {offsets = [0, 0], sizes = [8, 128], strides = [1, 1]} : vector<8x512xf32> to vector<8x128xf32>
    %87 = arith.negf %86 : vector<8x128xf32>
    %88 = math.exp %87 : vector<8x128xf32>
    %cst_32 = arith.constant 1.000000e+00 : f32
    %89 = vector.broadcast %cst_32 : f32 to vector<8x128xf32>
    %90 = arith.addf %89, %88 : vector<8x128xf32>
    %91 = arith.divf %89, %90 : vector<8x128xf32>
    %92 = vector.extract_strided_slice %85 {offsets = [0, 128], sizes = [8, 128], strides = [1, 1]} : vector<8x512xf32> to vector<8x128xf32>
    %93 = arith.negf %92 : vector<8x128xf32>
    %94 = math.exp %93 : vector<8x128xf32>
    %cst_33 = arith.constant 1.000000e+00 : f32
    %95 = vector.broadcast %cst_33 : f32 to vector<8x128xf32>
    %96 = arith.addf %95, %94 : vector<8x128xf32>
    %97 = arith.divf %95, %96 : vector<8x128xf32>
    %98 = vector.extract_strided_slice %85 {offsets = [0, 256], sizes = [8, 128], strides = [1, 1]} : vector<8x512xf32> to vector<8x128xf32>
    %99 = arith.negf %98 : vector<8x128xf32>
    %100 = math.exp %99 : vector<8x128xf32>
    %cst_34 = arith.constant 1.000000e+00 : f32
    %101 = vector.broadcast %cst_34 : f32 to vector<8x128xf32>
    %102 = arith.addf %101, %100 : vector<8x128xf32>
    %103 = arith.divf %101, %102 : vector<8x128xf32>
    %104 = vector.extract_strided_slice %85 {offsets = [0, 384], sizes = [8, 128], strides = [1, 1]} : vector<8x512xf32> to vector<8x128xf32>
    %105 = math.tanh %104 : vector<8x128xf32>
    %106 = arith.mulf %97, %75 : vector<8x128xf32>
    %107 = arith.mulf %91, %105 : vector<8x128xf32>
    %108 = arith.addf %106, %107 : vector<8x128xf32>
    %109 = math.tanh %108 : vector<8x128xf32>
    %110 = arith.mulf %103, %109 : vector<8x128xf32>
    %111 = arith.index_cast %81 : i32 to index
    %c0_35 = arith.constant 0 : index
    %112 = vector.load %arg10[%111, %c0_35] : memref<64x128xf32, #tpu.memory_space<vmem>>, vector<8x128xf32>
    tpu.vector_store %arg10[%111, %c0_35], %110 {strides = array<i32>} : memref<64x128xf32, #tpu.memory_space<vmem>>, vector<8x128xf32>,
    %c3_i32 = arith.constant 3 : i32
    %c8_i32_36 = arith.constant 8 : i32
    %113 = arith.muli %c3_i32, %c8_i32_36 : i32
    %114 = tpu.assume_multiple %113, 8 : i32
    %115 = arith.index_cast %114 : i32 to index
    %c0_37 = arith.constant 0 : index
    %116 = vector.load %arg9[%115, %c0_37] : memref<64x512xf32, #tpu.memory_space<vmem>>, vector<8x512xf32>
    %cst_38 = arith.constant dense<0.000000e+00> : vector<8x512xf32>
    %117 = tpu.matmul %110, %11, %cst_38 {dimension_numbers = #tpu.dot_dimension_numbers<[1], [0], [0], [1], [0, 0, 1, 1], [], []>} : vector<8x128xf32>, vector<128x512xf32>, vector<8x512xf32> -> vector<8x512xf32>
    %118 = arith.addf %116, %117 : vector<8x512xf32>
    %119 = vector.extract_strided_slice %118 {offsets = [0, 0], sizes = [8, 128], strides = [1, 1]} : vector<8x512xf32> to vector<8x128xf32>
    %120 = arith.negf %119 : vector<8x128xf32>
    %121 = math.exp %120 : vector<8x128xf32>
    %cst_39 = arith.constant 1.000000e+00 : f32
    %122 = vector.broadcast %cst_39 : f32 to vector<8x128xf32>
    %123 = arith.addf %122, %121 : vector<8x128xf32>
    %124 = arith.divf %122, %123 : vector<8x128xf32>
    %125 = vector.extract_strided_slice %118 {offsets = [0, 128], sizes = [8, 128], strides = [1, 1]} : vector<8x512xf32> to vector<8x128xf32>
    %126 = arith.negf %125 : vector<8x128xf32>
    %127 = math.exp %126 : vector<8x128xf32>
    %cst_40 = arith.constant 1.000000e+00 : f32
    %128 = vector.broadcast %cst_40 : f32 to vector<8x128xf32>
    %129 = arith.addf %128, %127 : vector<8x128xf32>
    %130 = arith.divf %128, %129 : vector<8x128xf32>
    %131 = vector.extract_strided_slice %118 {offsets = [0, 256], sizes = [8, 128], strides = [1, 1]} : vector<8x512xf32> to vector<8x128xf32>
    %132 = arith.negf %131 : vector<8x128xf32>
    %133 = math.exp %132 : vector<8x128xf32>
    %cst_41 = arith.constant 1.000000e+00 : f32
    %134 = vector.broadcast %cst_41 : f32 to vector<8x128xf32>
    %135 = arith.addf %134, %133 : vector<8x128xf32>
    %136 = arith.divf %134, %135 : vector<8x128xf32>
    %137 = vector.extract_strided_slice %118 {offsets = [0, 384], sizes = [8, 128], strides = [1, 1]} : vector<8x512xf32> to vector<8x128xf32>
    %138 = math.tanh %137 : vector<8x128xf32>
    %139 = arith.mulf %130, %108 : vector<8x128xf32>
    %140 = arith.mulf %124, %138 : vector<8x128xf32>
    %141 = arith.addf %139, %140 : vector<8x128xf32>
    %142 = math.tanh %141 : vector<8x128xf32>
    %143 = arith.mulf %136, %142 : vector<8x128xf32>
    %144 = arith.index_cast %114 : i32 to index
    %c0_42 = arith.constant 0 : index
    %145 = vector.load %arg10[%144, %c0_42] : memref<64x128xf32, #tpu.memory_space<vmem>>, vector<8x128xf32>
    tpu.vector_store %arg10[%144, %c0_42], %143 {strides = array<i32>} : memref<64x128xf32, #tpu.memory_space<vmem>>, vector<8x128xf32>,
    %c4_i32 = arith.constant 4 : i32
    %c8_i32_43 = arith.constant 8 : i32
    %146 = arith.muli %c4_i32, %c8_i32_43 : i32
    %147 = tpu.assume_multiple %146, 8 : i32
    %148 = arith.index_cast %147 : i32 to index
    %c0_44 = arith.constant 0 : index
    %149 = vector.load %arg9[%148, %c0_44] : memref<64x512xf32, #tpu.memory_space<vmem>>, vector<8x512xf32>
    %cst_45 = arith.constant dense<0.000000e+00> : vector<8x512xf32>
    %150 = tpu.matmul %143, %11, %cst_45 {dimension_numbers = #tpu.dot_dimension_numbers<[1], [0], [0], [1], [0, 0, 1, 1], [], []>} : vector<8x128xf32>, vector<128x512xf32>, vector<8x512xf32> -> vector<8x512xf32>
    %151 = arith.addf %149, %150 : vector<8x512xf32>
    %152 = vector.extract_strided_slice %151 {offsets = [0, 0], sizes = [8, 128], strides = [1, 1]} : vector<8x512xf32> to vector<8x128xf32>
    %153 = arith.negf %152 : vector<8x128xf32>
    %154 = math.exp %153 : vector<8x128xf32>
    %cst_46 = arith.constant 1.000000e+00 : f32
    %155 = vector.broadcast %cst_46 : f32 to vector<8x128xf32>
    %156 = arith.addf %155, %154 : vector<8x128xf32>
    %157 = arith.divf %155, %156 : vector<8x128xf32>
    %158 = vector.extract_strided_slice %151 {offsets = [0, 128], sizes = [8, 128], strides = [1, 1]} : vector<8x512xf32> to vector<8x128xf32>
    %159 = arith.negf %158 : vector<8x128xf32>
    %160 = math.exp %159 : vector<8x128xf32>
    %cst_47 = arith.constant 1.000000e+00 : f32
    %161 = vector.broadcast %cst_47 : f32 to vector<8x128xf32>
    %162 = arith.addf %161, %160 : vector<8x128xf32>
    %163 = arith.divf %161, %162 : vector<8x128xf32>
    %164 = vector.extract_strided_slice %151 {offsets = [0, 256], sizes = [8, 128], strides = [1, 1]} : vector<8x512xf32> to vector<8x128xf32>
    %165 = arith.negf %164 : vector<8x128xf32>
    %166 = math.exp %165 : vector<8x128xf32>
    %cst_48 = arith.constant 1.000000e+00 : f32
    %167 = vector.broadcast %cst_48 : f32 to vector<8x128xf32>
    %168 = arith.addf %167, %166 : vector<8x128xf32>
    %169 = arith.divf %167, %168 : vector<8x128xf32>
    %170 = vector.extract_strided_slice %151 {offsets = [0, 384], sizes = [8, 128], strides = [1, 1]} : vector<8x512xf32> to vector<8x128xf32>
    %171 = math.tanh %170 : vector<8x128xf32>
    %172 = arith.mulf %163, %141 : vector<8x128xf32>
    %173 = arith.mulf %157, %171 : vector<8x128xf32>
    %174 = arith.addf %172, %173 : vector<8x128xf32>
    %175 = math.tanh %174 : vector<8x128xf32>
    %176 = arith.mulf %169, %175 : vector<8x128xf32>
    %177 = arith.index_cast %147 : i32 to index
    %c0_49 = arith.constant 0 : index
    %178 = vector.load %arg10[%177, %c0_49] : memref<64x128xf32, #tpu.memory_space<vmem>>, vector<8x128xf32>
    tpu.vector_store %arg10[%177, %c0_49], %176 {strides = array<i32>} : memref<64x128xf32, #tpu.memory_space<vmem>>, vector<8x128xf32>,
    %c5_i32 = arith.constant 5 : i32
    %c8_i32_50 = arith.constant 8 : i32
    %179 = arith.muli %c5_i32, %c8_i32_50 : i32
    %180 = tpu.assume_multiple %179, 8 : i32
    %181 = arith.index_cast %180 : i32 to index
    %c0_51 = arith.constant 0 : index
    %182 = vector.load %arg9[%181, %c0_51] : memref<64x512xf32, #tpu.memory_space<vmem>>, vector<8x512xf32>
    %cst_52 = arith.constant dense<0.000000e+00> : vector<8x512xf32>
    %183 = tpu.matmul %176, %11, %cst_52 {dimension_numbers = #tpu.dot_dimension_numbers<[1], [0], [0], [1], [0, 0, 1, 1], [], []>} : vector<8x128xf32>, vector<128x512xf32>, vector<8x512xf32> -> vector<8x512xf32>
    %184 = arith.addf %182, %183 : vector<8x512xf32>
    %185 = vector.extract_strided_slice %184 {offsets = [0, 0], sizes = [8, 128], strides = [1, 1]} : vector<8x512xf32> to vector<8x128xf32>
    %186 = arith.negf %185 : vector<8x128xf32>
    %187 = math.exp %186 : vector<8x128xf32>
    %cst_53 = arith.constant 1.000000e+00 : f32
    %188 = vector.broadcast %cst_53 : f32 to vector<8x128xf32>
    %189 = arith.addf %188, %187 : vector<8x128xf32>
    %190 = arith.divf %188, %189 : vector<8x128xf32>
    %191 = vector.extract_strided_slice %184 {offsets = [0, 128], sizes = [8, 128], strides = [1, 1]} : vector<8x512xf32> to vector<8x128xf32>
    %192 = arith.negf %191 : vector<8x128xf32>
    %193 = math.exp %192 : vector<8x128xf32>
    %cst_54 = arith.constant 1.000000e+00 : f32
    %194 = vector.broadcast %cst_54 : f32 to vector<8x128xf32>
    %195 = arith.addf %194, %193 : vector<8x128xf32>
    %196 = arith.divf %194, %195 : vector<8x128xf32>
    %197 = vector.extract_strided_slice %184 {offsets = [0, 256], sizes = [8, 128], strides = [1, 1]} : vector<8x512xf32> to vector<8x128xf32>
    %198 = arith.negf %197 : vector<8x128xf32>
    %199 = math.exp %198 : vector<8x128xf32>
    %cst_55 = arith.constant 1.000000e+00 : f32
    %200 = vector.broadcast %cst_55 : f32 to vector<8x128xf32>
    %201 = arith.addf %200, %199 : vector<8x128xf32>
    %202 = arith.divf %200, %201 : vector<8x128xf32>
    %203 = vector.extract_strided_slice %184 {offsets = [0, 384], sizes = [8, 128], strides = [1, 1]} : vector<8x512xf32> to vector<8x128xf32>
    %204 = math.tanh %203 : vector<8x128xf32>
    %205 = arith.mulf %196, %174 : vector<8x128xf32>
    %206 = arith.mulf %190, %204 : vector<8x128xf32>
    %207 = arith.addf %205, %206 : vector<8x128xf32>
    %208 = math.tanh %207 : vector<8x128xf32>
    %209 = arith.mulf %202, %208 : vector<8x128xf32>
    %210 = arith.index_cast %180 : i32 to index
    %c0_56 = arith.constant 0 : index
    %211 = vector.load %arg10[%210, %c0_56] : memref<64x128xf32, #tpu.memory_space<vmem>>, vector<8x128xf32>
    tpu.vector_store %arg10[%210, %c0_56], %209 {strides = array<i32>} : memref<64x128xf32, #tpu.memory_space<vmem>>, vector<8x128xf32>,
    %c6_i32 = arith.constant 6 : i32
    %c8_i32_57 = arith.constant 8 : i32
    %212 = arith.muli %c6_i32, %c8_i32_57 : i32
    %213 = tpu.assume_multiple %212, 8 : i32
    %214 = arith.index_cast %213 : i32 to index
    %c0_58 = arith.constant 0 : index
    %215 = vector.load %arg9[%214, %c0_58] : memref<64x512xf32, #tpu.memory_space<vmem>>, vector<8x512xf32>
    %cst_59 = arith.constant dense<0.000000e+00> : vector<8x512xf32>
    %216 = tpu.matmul %209, %11, %cst_59 {dimension_numbers = #tpu.dot_dimension_numbers<[1], [0], [0], [1], [0, 0, 1, 1], [], []>} : vector<8x128xf32>, vector<128x512xf32>, vector<8x512xf32> -> vector<8x512xf32>
    %217 = arith.addf %215, %216 : vector<8x512xf32>
    %218 = vector.extract_strided_slice %217 {offsets = [0, 0], sizes = [8, 128], strides = [1, 1]} : vector<8x512xf32> to vector<8x128xf32>
    %219 = arith.negf %218 : vector<8x128xf32>
    %220 = math.exp %219 : vector<8x128xf32>
    %cst_60 = arith.constant 1.000000e+00 : f32
    %221 = vector.broadcast %cst_60 : f32 to vector<8x128xf32>
    %222 = arith.addf %221, %220 : vector<8x128xf32>
    %223 = arith.divf %221, %222 : vector<8x128xf32>
    %224 = vector.extract_strided_slice %217 {offsets = [0, 128], sizes = [8, 128], strides = [1, 1]} : vector<8x512xf32> to vector<8x128xf32>
    %225 = arith.negf %224 : vector<8x128xf32>
    %226 = math.exp %225 : vector<8x128xf32>
    %cst_61 = arith.constant 1.000000e+00 : f32
    %227 = vector.broadcast %cst_61 : f32 to vector<8x128xf32>
    %228 = arith.addf %227, %226 : vector<8x128xf32>
    %229 = arith.divf %227, %228 : vector<8x128xf32>
    %230 = vector.extract_strided_slice %217 {offsets = [0, 256], sizes = [8, 128], strides = [1, 1]} : vector<8x512xf32> to vector<8x128xf32>
    %231 = arith.negf %230 : vector<8x128xf32>
    %232 = math.exp %231 : vector<8x128xf32>
    %cst_62 = arith.constant 1.000000e+00 : f32
    %233 = vector.broadcast %cst_62 : f32 to vector<8x128xf32>
    %234 = arith.addf %233, %232 : vector<8x128xf32>
    %235 = arith.divf %233, %234 : vector<8x128xf32>
    %236 = vector.extract_strided_slice %217 {offsets = [0, 384], sizes = [8, 128], strides = [1, 1]} : vector<8x512xf32> to vector<8x128xf32>
    %237 = math.tanh %236 : vector<8x128xf32>
    %238 = arith.mulf %229, %207 : vector<8x128xf32>
    %239 = arith.mulf %223, %237 : vector<8x128xf32>
    %240 = arith.addf %238, %239 : vector<8x128xf32>
    %241 = math.tanh %240 : vector<8x128xf32>
    %242 = arith.mulf %235, %241 : vector<8x128xf32>
    %243 = arith.index_cast %213 : i32 to index
    %c0_63 = arith.constant 0 : index
    %244 = vector.load %arg10[%243, %c0_63] : memref<64x128xf32, #tpu.memory_space<vmem>>, vector<8x128xf32>
    tpu.vector_store %arg10[%243, %c0_63], %242 {strides = array<i32>} : memref<64x128xf32, #tpu.memory_space<vmem>>, vector<8x128xf32>,
    %c7_i32 = arith.constant 7 : i32
    %c8_i32_64 = arith.constant 8 : i32
    %245 = arith.muli %c7_i32, %c8_i32_64 : i32
    %246 = tpu.assume_multiple %245, 8 : i32
    %247 = arith.index_cast %246 : i32 to index
    %c0_65 = arith.constant 0 : index
    %248 = vector.load %arg9[%247, %c0_65] : memref<64x512xf32, #tpu.memory_space<vmem>>, vector<8x512xf32>
    %cst_66 = arith.constant dense<0.000000e+00> : vector<8x512xf32>
    %249 = tpu.matmul %242, %11, %cst_66 {dimension_numbers = #tpu.dot_dimension_numbers<[1], [0], [0], [1], [0, 0, 1, 1], [], []>} : vector<8x128xf32>, vector<128x512xf32>, vector<8x512xf32> -> vector<8x512xf32>
    %250 = arith.addf %248, %249 : vector<8x512xf32>
    %251 = vector.extract_strided_slice %250 {offsets = [0, 0], sizes = [8, 128], strides = [1, 1]} : vector<8x512xf32> to vector<8x128xf32>
    %252 = arith.negf %251 : vector<8x128xf32>
    %253 = math.exp %252 : vector<8x128xf32>
    %cst_67 = arith.constant 1.000000e+00 : f32
    %254 = vector.broadcast %cst_67 : f32 to vector<8x128xf32>
    %255 = arith.addf %254, %253 : vector<8x128xf32>
    %256 = arith.divf %254, %255 : vector<8x128xf32>
    %257 = vector.extract_strided_slice %250 {offsets = [0, 128], sizes = [8, 128], strides = [1, 1]} : vector<8x512xf32> to vector<8x128xf32>
    %258 = arith.negf %257 : vector<8x128xf32>
    %259 = math.exp %258 : vector<8x128xf32>
    %cst_68 = arith.constant 1.000000e+00 : f32
    %260 = vector.broadcast %cst_68 : f32 to vector<8x128xf32>
    %261 = arith.addf %260, %259 : vector<8x128xf32>
    %262 = arith.divf %260, %261 : vector<8x128xf32>
    %263 = vector.extract_strided_slice %250 {offsets = [0, 256], sizes = [8, 128], strides = [1, 1]} : vector<8x512xf32> to vector<8x128xf32>
    %264 = arith.negf %263 : vector<8x128xf32>
    %265 = math.exp %264 : vector<8x128xf32>
    %cst_69 = arith.constant 1.000000e+00 : f32
    %266 = vector.broadcast %cst_69 : f32 to vector<8x128xf32>
    %267 = arith.addf %266, %265 : vector<8x128xf32>
    %268 = arith.divf %266, %267 : vector<8x128xf32>
    %269 = vector.extract_strided_slice %250 {offsets = [0, 384], sizes = [8, 128], strides = [1, 1]} : vector<8x512xf32> to vector<8x128xf32>
    %270 = math.tanh %269 : vector<8x128xf32>
    %271 = arith.mulf %262, %240 : vector<8x128xf32>
    %272 = arith.mulf %256, %270 : vector<8x128xf32>
    %273 = arith.addf %271, %272 : vector<8x128xf32>
    %274 = math.tanh %273 : vector<8x128xf32>
    %275 = arith.mulf %268, %274 : vector<8x128xf32>
    %276 = arith.index_cast %246 : i32 to index
    %c0_70 = arith.constant 0 : index
    %277 = vector.load %arg10[%276, %c0_70] : memref<64x128xf32, #tpu.memory_space<vmem>>, vector<8x128xf32>
    tpu.vector_store %arg10[%276, %c0_70], %275 {strides = array<i32>} : memref<64x128xf32, #tpu.memory_space<vmem>>, vector<8x128xf32>,
    %c8_i32_71 = arith.constant 8 : i32
    %c0_72 = arith.constant 0 : index
    %c0_73 = arith.constant 0 : index
    %278 = vector.load %arg11[%c0_72, %c0_73] : memref<8x128xf32, #tpu.memory_space<vmem>>, vector<8x128xf32>
    tpu.vector_store %arg11[%c0_72, %c0_73], %275 {strides = array<i32>} : memref<8x128xf32, #tpu.memory_space<vmem>>, vector<8x128xf32>,
    %c0_74 = arith.constant 0 : index
    %c0_75 = arith.constant 0 : index
    %279 = vector.load %arg12[%c0_74, %c0_75] : memref<8x128xf32, #tpu.memory_space<vmem>>, vector<8x128xf32>
    tpu.vector_store %arg12[%c0_74, %c0_75], %273 {strides = array<i32>} : memref<8x128xf32, #tpu.memory_space<vmem>>, vector<8x128xf32>,
    %c0_76 = arith.constant 0 : index
    %c0_77 = arith.constant 0 : index
    %280 = vector.load %arg10[%c0_76, %c0_77] : memref<64x128xf32, #tpu.memory_space<vmem>>, vector<64x128xf32>
    %c0_78 = arith.constant 0 : index
    %c0_79 = arith.constant 0 : index
    %281 = vector.load %arg6[%c0_78, %c0_79] : memref<128x128xf32, #tpu.memory_space<vmem>>, vector<128x128xf32>
    %cst_80 = arith.constant dense<0.000000e+00> : vector<64x128xf32>
    %282 = tpu.matmul %280, %281, %cst_80 {dimension_numbers = #tpu.dot_dimension_numbers<[1], [0], [0], [1], [0, 0, 1, 1], [], []>} : vector<64x128xf32>, vector<128x128xf32>, vector<64x128xf32> -> vector<64x128xf32>
    %c0_81 = arith.constant 0 : index
    %c0_82 = arith.constant 0 : index
    %283 = vector.load %arg7[%c0_81, %c0_82] : memref<1x128xf32, #tpu.memory_space<vmem>>, vector<1x128xf32>
    %284 = vector.broadcast %283 : vector<1x128xf32> to vector<64x128xf32>
    %285 = arith.addf %282, %284 : vector<64x128xf32>
    %286 = vector.shape_cast %285 : vector<64x128xf32> to vector<8x8x128xf32>
    %c0_83 = arith.constant 0 : index
    %c0_84 = arith.constant 0 : index
    %c0_85 = arith.constant 0 : index
    %287 = vector.load %arg8[%c0_83, %c0_84, %c0_85] : memref<8x8x128xf32, #tpu.memory_space<vmem>>, vector<8x8x128xf32>
    tpu.vector_store %arg8[%c0_83, %c0_84, %c0_85], %286 {strides = array<i32>} : memref<8x8x128xf32, #tpu.memory_space<vmem>>, vector<8x8x128xf32>,
    return
  }
  func.func @transform_0(%arg0: i32, %arg1: i32) -> (i32, i32, i32) {
    %c0_i32 = arith.constant 0 : i32
    %c0_i32_0 = arith.constant 0 : i32
    return %arg1, %arg0, %c0_i32 : i32, i32, i32
  }
  func.func @transform_1(%arg0: i32, %arg1: i32) -> (i32, i32) {
    %c0_i32 = arith.constant 0 : i32
    %c0_i32_0 = arith.constant 0 : i32
    %c0_i32_1 = arith.constant 0 : i32
    return %c0_i32, %c0_i32_0 : i32, i32
  }
  func.func @transform_2(%arg0: i32, %arg1: i32) -> (i32, i32) {
    %c0_i32 = arith.constant 0 : i32
    %c0_i32_0 = arith.constant 0 : i32
    %c0_i32_1 = arith.constant 0 : i32
    return %c0_i32, %c0_i32_0 : i32, i32
  }
  func.func @transform_3(%arg0: i32, %arg1: i32) -> (i32, i32) {
    %c0_i32 = arith.constant 0 : i32
    %c0_i32_0 = arith.constant 0 : i32
    %c0_i32_1 = arith.constant 0 : i32
    return %c0_i32, %c0_i32_0 : i32, i32
  }
  func.func @transform_4(%arg0: i32, %arg1: i32) -> (i32, i32) {
    %c0_i32 = arith.constant 0 : i32
    %c0_i32_0 = arith.constant 0 : i32
    %c0_i32_1 = arith.constant 0 : i32
    return %c0_i32, %c0_i32_0 : i32, i32
  }
  func.func @transform_5(%arg0: i32, %arg1: i32) -> (i32, i32) {
    %c0_i32 = arith.constant 0 : i32
    %c0_i32_0 = arith.constant 0 : i32
    %c0_i32_1 = arith.constant 0 : i32
    return %c0_i32, %c0_i32_0 : i32, i32
  }
  func.func @transform_6(%arg0: i32, %arg1: i32) -> (i32, i32, i32) {
    %c0_i32 = arith.constant 0 : i32
    %c0_i32_0 = arith.constant 0 : i32
    return %arg1, %arg0, %c0_i32 : i32, i32, i32
  }
}

</mosaic_0001>

<llo_original>
// kernel: lstm_forward.1
$region0: #{lstm_forward.1}
  #allocation0 [shape = 'u32[]', space=smem, size = 0x4, offset = 0x4, fixed_abs, tag = 'smem constant byte address 0x4 - core index']
  #allocation1 [shape = 'u32[144,128]{1,0:T(1,128)}', space=vmem, size = 0x12000, scoped, tag = 'internal scratch']
  #allocation2 [shape = 'f32[64,512]{1,0:T(8,128)}', space=vmem, size = 0x20000, scoped, tag = 'scratch operand']
  #allocation3 [shape = 'f32[64,128]{1,0:T(8,128)}', space=vmem, size = 0x8000, scoped, tag = 'scratch operand']
  #allocation4 [shape = 'f32[8,128]{1,0:T(8,128)}', space=vmem, size = 0x1000, scoped, tag = 'scratch operand']
  #allocation5 [shape = 'f32[8,128]{1,0:T(8,128)}', space=vmem, size = 0x1000, scoped, tag = 'scratch operand']
  %s0 = inlined_call_operand.vmem [shape: f32[8,8,16], index: 0, kind: input, shape index: {}]
  %s1 = inlined_call_operand.vmem [shape: f32[16,512], index: 1, kind: input, shape index: {}]
  %s2 = inlined_call_operand.vmem [shape: f32[128,512], index: 2, kind: input, shape index: {}]
  %s3 = inlined_call_operand.vmem [shape: f32[1,512], index: 3, kind: input, shape index: {}]
  %s4 = inlined_call_operand.vmem [shape: f32[128,128], index: 4, kind: input, shape index: {}]
  %s5 = inlined_call_operand.vmem [shape: f32[1,128], index: 5, kind: input, shape index: {}]
  %s6 = inlined_call_operand.vmem [shape: f32[8,8,128], index: 6, kind: output, shape index: {}]
  %s7 = sld [smem:[#allocation0]]
  $region38: #{lstm_forward.1} parent=0
    _
  %s9 = ssub.s32 1, %s7
  %s10 = scalar_select 0, %s9, %s7
  // Predicated region
  $region2: #{lstm_forward.1} parent=0 // pred_check
    _
  $region3: #{lstm_forward.1} parent=0 // pred_check_branch
    %12 = sbr.rel (0) target = $region5
  $region4: #{lstm_forward.1} parent=0 // pred_region
    _
  $region5: #{lstm_forward.1} parent=0 // pred_fallthru
    _
  // Predicated region
  $region6: #{lstm_forward.1} parent=0 // pred_check
    _
  $region7: #{lstm_forward.1} parent=0 // pred_check_branch
    %14 = sbr.rel (0) target = $region9
  $region8: #{lstm_forward.1} parent=0 // pred_region
    _
  $region9: #{lstm_forward.1} parent=0 // pred_fallthru
    _
  // Predicated region
  $region10: #{lstm_forward.1} parent=0 // pred_check
    _
  $region11: #{lstm_forward.1} parent=0 // pred_check_branch
    %16 = sbr.rel (0) target = $region13
  $region12: #{lstm_forward.1} parent=0 // pred_region
    _
  $region13: #{lstm_forward.1} parent=0 // pred_fallthru
    _
  // Predicated region
  $region14: #{lstm_forward.1} parent=0 // pred_check
    _
  $region15: #{lstm_forward.1} parent=0 // pred_check_branch
    %18 = sbr.rel (0) target = $region17
  $region16: #{lstm_forward.1} parent=0 // pred_region
    _
  $region17: #{lstm_forward.1} parent=0 // pred_fallthru
    _
  // Predicated region
  $region18: #{lstm_forward.1} parent=0 // pred_check
    _
  $region19: #{lstm_forward.1} parent=0 // pred_check_branch
    %20 = sbr.rel (0) target = $region21
  $region20: #{lstm_forward.1} parent=0 // pred_region
    _
  $region21: #{lstm_forward.1} parent=0 // pred_fallthru
    _
  // Predicated region
  $region22: #{lstm_forward.1} parent=0 // pred_check
    _
  $region23: #{lstm_forward.1} parent=0 // pred_check_branch
    %22 = sbr.rel (0) target = $region25
  $region24: #{lstm_forward.1} parent=0 // pred_region
    _
  $region25: #{lstm_forward.1} parent=0 // pred_fallthru
    _
  %p23 = scmp.eq.s32.totalorder 0, 0
  // Predicated region
  $region26: #{lstm_forward.1} parent=0 // pred_check
    %p24 = pneg %p23
  $region27: #{lstm_forward.1} parent=0 // pred_check_branch
    %26 = sbr.rel (%p24) target = $region29
  $region28: #{lstm_forward.1} parent=0 // pred_region
    %27 = vst [vmem:[#allocation4] sm:$0xff] 0.0
    %28 = vst [vmem:[#allocation5] sm:$0xff] 0.0
  $region29: #{lstm_forward.1} parent=0 // pred_fallthru
    _
  %v29 = vld [vmem:[%s0] sm:$0xff]
  %v30 = vld [vmem:[%s0 + $0x8] sm:$0xff]
  %v31 = vld [vmem:[%s0 + $0x10] sm:$0xff]
  %v32 = vld [vmem:[%s0 + $0x18] sm:$0xff]
  %v33 = vld [vmem:[%s0 + $0x20] sm:$0xff]
  %v34 = vld [vmem:[%s0 + $0x28] sm:$0xff]
  %v35 = vld [vmem:[%s0 + $0x30] sm:$0xff]
  %v36 = vld [vmem:[%s0 + $0x38] sm:$0xff]
  %v37 = vld [vmem:[%s1] sm:$0xff]
  %v38 = vld [vmem:[%s1 + $0x8] sm:$0xff]
  %v39 = vld [vmem:[%s1 + $0x10] sm:$0xff]
  %v40 = vld [vmem:[%s1 + $0x18] sm:$0xff]
  %v41 = vld [vmem:[%s1 + $0x20] sm:$0xff]
  %v42 = vld [vmem:[%s1 + $0x28] sm:$0xff]
  %v43 = vld [vmem:[%s1 + $0x30] sm:$0xff]
  %v44 = vld [vmem:[%s1 + $0x38] sm:$0xff]
  %v45 = vld [vmem:[%s3] sm:$0xf]
  %v47 = vlaneseq
  %v48 = vshrl.u32 %v47, 7
  %v49 = vsub.s32 0, %v48
  %v50 = vrot.slane %v45, %v49
  %v51 = vlaneseq
  %v52 = vshrl.u32 %v51, 7
  %v53 = vsub.s32 1, %v52
  %v54 = vrot.slane %v45, %v53
  %v55 = vlaneseq
  %v56 = vshrl.u32 %v55, 7
  %v57 = vsub.s32 2, %v56
  %v58 = vrot.slane %v45, %v57
  %v59 = vlaneseq
  %v60 = vshrl.u32 %v59, 7
  %v61 = vsub.s32 3, %v60
  %v62 = vrot.slane %v45, %v61
  %vm67 = vcmask 130048
  %v69 = vsel %vm67, %v29, 0
  %v72 = vsel %vm67, %v30, 0
  %v75 = vsel %vm67, %v31, 0
  %v78 = vsel %vm67, %v32, 0
  %v81 = vsel %vm67, %v33, 0
  %v84 = vsel %vm67, %v34, 0
  %v87 = vsel %vm67, %v35, 0
  %v90 = vsel %vm67, %v36, 0
  %92 = vmatprep.subr.mxu0 %v38
  %93 = vmatpush1.msra.mxu0 %v37
  %94 = vmatprep.subr.mxu0 %v42
  %95 = vmatpush1.msra.mxu0 %v41
  %96 = vmatprep.subr.mxu0 0.0
  %97 = vmatpush1.msra.mxu0 0.0
  %98 = vmatprep.subr.mxu0 0.0
  %99 = vmatpush1.msra.mxu0 0.0
  %100 = vmatprep.subr.mxu0 0.0
  %101 = vmatpush1.msra.mxu0 0.0
  %102 = vmatprep.subr.mxu0 0.0
  %103 = vmatpush1.msra.mxu0 0.0
  %104 = vmatprep.subr.mxu0 0.0
  %105 = vmatpush1.msra.mxu0 0.0
  %106 = vmatprep.subr.mxu0 0.0
  %107 = vmatpush1.msra.mxu0 0.0
  %108 = vmatprep.subr.mxu0 0.0
  %109 = vmatpush1.msra.mxu0 0.0
  %110 = vmatprep.subr.mxu0 0.0
  %111 = vmatpush1.msra.mxu0 0.0
  %112 = vmatprep.subr.mxu0 0.0
  %113 = vmatpush1.msra.mxu0 0.0
  %114 = vmatprep.subr.mxu0 0.0
  %115 = vmatpush1.msra.mxu0 0.0
  %116 = vmatprep.subr.mxu0 0.0
  %117 = vmatpush1.msra.mxu0 0.0
  %118 = vmatprep.subr.mxu0 0.0
  %119 = vmatpush1.msra.mxu0 0.0
  %120 = vmatprep.subr.mxu0 0.0
  %121 = vmatpush1.msra.mxu0 0.0
  %122 = vmatprep.subr.mxu0 0.0
  %123 = vmatpush1.msra.mxu0 0.0
  %124 = vmatprep.subr.mxu0 0.0
  %125 = vmatpush1.msra.mxu0 0.0
  %126 = vmatprep.subr.mxu0 0.0
  %127 = vmatpush1.msra.mxu0 0.0
  %128 = vmatprep.subr.mxu0 0.0
  %129 = vmatpush1.msra.mxu0 0.0
  %130 = vmatprep.subr.mxu0 0.0
  %131 = vmatpush1.msra.mxu0 0.0
  %132 = vmatprep.subr.mxu0 0.0
  %133 = vmatpush1.msra.mxu0 0.0
  %134 = vmatprep.subr.mxu0 0.0
  %135 = vmatpush1.msra.mxu0 0.0
  %136 = vmatprep.subr.mxu0 0.0
  %137 = vmatpush1.msra.mxu0 0.0
  %138 = vmatprep.subr.mxu0 0.0
  %139 = vmatpush1.msra.mxu0 0.0
  %140 = vmatprep.subr.mxu0 0.0
  %141 = vmatpush1.msra.mxu0 0.0
  %142 = vmatprep.subr.mxu0 0.0
  %143 = vmatpush1.msra.mxu0 0.0
  %144 = vmatprep.subr.mxu0 0.0
  %145 = vmatpush1.msra.mxu0 0.0
  %146 = vmatprep.subr.mxu0 0.0
  %147 = vmatpush1.msra.mxu0 0.0
  %148 = vmatprep.subr.mxu0 0.0
  %149 = vmatpush1.msra.mxu0 0.0
  %150 = vmatprep.subr.mxu0 0.0
  %151 = vmatpush1.msra.mxu0 0.0
  %152 = vmatprep.subr.mxu0 0.0
  %153 = vmatpush1.msra.mxu0 0.0
  %154 = vmatprep.subr.mxu0 0.0
  %155 = vmatpush1.msra.mxu0 0.0
  %156 = vmatprep.mubr.f32.mxu0 0.0
  %157 = vmatmul.mubr.f32.gmra.mrb[0].mxu0 %v69
  %v158 = vpop.f32.mrb[0].mxu0
  %v159 = vadd.f32 %v50, %v158
  %v160 = vpop.f32.mrb[0].mxu0
  %v161 = vadd.f32 %v54, %v160
  %162 = vmatprep.mubr.f32.mxu0 0.0
  %163 = vmatmul.mubr.f32.gmra.mrb[0].mxu0 %v72
  %v164 = vpop.f32.mrb[0].mxu0
  %v165 = vadd.f32 %v50, %v164
  %v166 = vpop.f32.mrb[0].mxu0
  %v167 = vadd.f32 %v54, %v166
  %168 = vmatprep.mubr.f32.mxu0 0.0
  %169 = vmatmul.mubr.f32.gmra.mrb[0].mxu0 %v75
  %v170 = vpop.f32.mrb[0].mxu0
  %v171 = vadd.f32 %v50, %v170
  %v172 = vpop.f32.mrb[0].mxu0
  %v173 = vadd.f32 %v54, %v172
  %174 = vmatprep.mubr.f32.mxu0 0.0
  %175 = vmatmul.mubr.f32.gmra.mrb[0].mxu0 %v78
  %v176 = vpop.f32.mrb[0].mxu0
  %v177 = vadd.f32 %v50, %v176
  %v178 = vpop.f32.mrb[0].mxu0
  %v179 = vadd.f32 %v54, %v178
  %180 = vmatprep.mubr.f32.mxu0 0.0
  %181 = vmatmul.mubr.f32.gmra.mrb[0].mxu0 %v81
  %v182 = vpop.f32.mrb[0].mxu0
  %v183 = vadd.f32 %v50, %v182
  %v184 = vpop.f32.mrb[0].mxu0
  %v185 = vadd.f32 %v54, %v184
  %186 = vmatprep.mubr.f32.mxu0 0.0
  %187 = vmatmul.mubr.f32.gmra.mrb[0].mxu0 %v84
  %v188 = vpop.f32.mrb[0].mxu0
  %v189 = vadd.f32 %v50, %v188
  %v190 = vpop.f32.mrb[0].mxu0
  %v191 = vadd.f32 %v54, %v190
  %192 = vmatprep.mubr.f32.mxu0 0.0
  %193 = vmatmul.mubr.f32.gmra.mrb[0].mxu0 %v87
  %v194 = vpop.f32.mrb[0].mxu0
  %v195 = vadd.f32 %v50, %v194
  %v196 = vpop.f32.mrb[0].mxu0
  %v197 = vadd.f32 %v54, %v196
  %198 = vmatprep.mubr.f32.mxu0 0.0
  %199 = vmatmul.mubr.f32.gmra.mrb[0].mxu0 %v90
  %v200 = vpop.f32.mrb[0].mxu0
  %v201 = vadd.f32 %v50, %v200
  %v202 = vpop.f32.mrb[0].mxu0
  %v203 = vadd.f32 %v54, %v202
  %204 = vdwg.mxu0
  %205 = vmatprep.subr.mxu0 %v40
  %206 = vmatpush1.msra.mxu0 %v39
  %207 = vmatprep.subr.mxu0 %v44
  %208 = vmatpush1.msra.mxu0 %v43
  %209 = vmatprep.subr.mxu0 0.0
  %210 = vmatpush1.msra.mxu0 0.0
  %211 = vmatprep.subr.mxu0 0.0
  %212 = vmatpush1.msra.mxu0 0.0
  %213 = vmatprep.subr.mxu0 0.0
  %214 = vmatpush1.msra.mxu0 0.0
  %215 = vmatprep.subr.mxu0 0.0
  %216 = vmatpush1.msra.mxu0 0.0
  %217 = vmatprep.subr.mxu0 0.0
  %218 = vmatpush1.msra.mxu0 0.0
  %219 = vmatprep.subr.mxu0 0.0
  %220 = vmatpush1.msra.mxu0 0.0
  %221 = vmatprep.subr.mxu0 0.0
  %222 = vmatpush1.msra.mxu0 0.0
  %223 = vmatprep.subr.mxu0 0.0
  %224 = vmatpush1.msra.mxu0 0.0
  %225 = vmatprep.subr.mxu0 0.0
  %226 = vmatpush1.msra.mxu0 0.0
  %227 = vmatprep.subr.mxu0 0.0
  %228 = vmatpush1.msra.mxu0 0.0
  %229 = vmatprep.subr.mxu0 0.0
  %230 = vmatpush1.msra.mxu0 0.0
  %231 = vmatprep.subr.mxu0 0.0
  %232 = vmatpush1.msra.mxu0 0.0
  %233 = vmatprep.subr.mxu0 0.0
  %234 = vmatpush1.msra.mxu0 0.0
  %235 = vmatprep.subr.mxu0 0.0
  %236 = vmatpush1.msra.mxu0 0.0
  %237 = vmatprep.subr.mxu0 0.0
  %238 = vmatpush1.msra.mxu0 0.0
  %239 = vmatprep.subr.mxu0 0.0
  %240 = vmatpush1.msra.mxu0 0.0
  %241 = vmatprep.subr.mxu0 0.0
  %242 = vmatpush1.msra.mxu0 0.0
  %243 = vmatprep.subr.mxu0 0.0
  %244 = vmatpush1.msra.mxu0 0.0
  %245 = vmatprep.subr.mxu0 0.0
  %246 = vmatpush1.msra.mxu0 0.0
  %247 = vmatprep.subr.mxu0 0.0
  %248 = vmatpush1.msra.mxu0 0.0
  %249 = vmatprep.subr.mxu0 0.0
  %250 = vmatpush1.msra.mxu0 0.0
  %251 = vmatprep.subr.mxu0 0.0
  %252 = vmatpush1.msra.mxu0 0.0
  %253 = vmatprep.subr.mxu0 0.0
  %254 = vmatpush1.msra.mxu0 0.0
  %255 = vmatprep.subr.mxu0 0.0
  %256 = vmatpush1.msra.mxu0 0.0
  %257 = vmatprep.subr.mxu0 0.0
  %258 = vmatpush1.msra.mxu0 0.0
  %259 = vmatprep.subr.mxu0 0.0
  %260 = vmatpush1.msra.mxu0 0.0
  %261 = vmatprep.subr.mxu0 0.0
  %262 = vmatpush1.msra.mxu0 0.0
  %263 = vmatprep.subr.mxu0 0.0
  %264 = vmatpush1.msra.mxu0 0.0
  %265 = vmatprep.subr.mxu0 0.0
  %266 = vmatpush1.msra.mxu0 0.0
  %267 = vmatprep.subr.mxu0 0.0
  %268 = vmatpush1.msra.mxu0 0.0
  %269 = vmatprep.mubr.f32.mxu0 0.0
  %270 = vmatmul.mubr.f32.gmra.mrb[0].mxu0 %v69
  %v271 = vpop.f32.mrb[0].mxu0
  %v272 = vadd.f32 %v58, %v271
  %v273 = vpop.f32.mrb[0].mxu0
  %v274 = vadd.f32 %v62, %v273
  %275 = vmatprep.mubr.f32.mxu0 0.0
  %276 = vmatmul.mubr.f32.gmra.mrb[0].mxu0 %v72
  %v277 = vpop.f32.mrb[0].mxu0
  %v278 = vadd.f32 %v58, %v277
  %v279 = vpop.f32.mrb[0].mxu0
  %v280 = vadd.f32 %v62, %v279
  %281 = vmatprep.mubr.f32.mxu0 0.0
  %282 = vmatmul.mubr.f32.gmra.mrb[0].mxu0 %v75
  %v283 = vpop.f32.mrb[0].mxu0
  %v284 = vadd.f32 %v58, %v283
  %v285 = vpop.f32.mrb[0].mxu0
  %v286 = vadd.f32 %v62, %v285
  %287 = vmatprep.mubr.f32.mxu0 0.0
  %288 = vmatmul.mubr.f32.gmra.mrb[0].mxu0 %v78
  %v289 = vpop.f32.mrb[0].mxu0
  %v290 = vadd.f32 %v58, %v289
  %v291 = vpop.f32.mrb[0].mxu0
  %v292 = vadd.f32 %v62, %v291
  %293 = vmatprep.mubr.f32.mxu0 0.0
  %294 = vmatmul.mubr.f32.gmra.mrb[0].mxu0 %v81
  %v295 = vpop.f32.mrb[0].mxu0
  %v296 = vadd.f32 %v58, %v295
  %v297 = vpop.f32.mrb[0].mxu0
  %v298 = vadd.f32 %v62, %v297
  %299 = vmatprep.mubr.f32.mxu0 0.0
  %300 = vmatmul.mubr.f32.gmra.mrb[0].mxu0 %v84
  %v301 = vpop.f32.mrb[0].mxu0
  %v302 = vadd.f32 %v58, %v301
  %v303 = vpop.f32.mrb[0].mxu0
  %v304 = vadd.f32 %v62, %v303
  %305 = vmatprep.mubr.f32.mxu0 0.0
  %306 = vmatmul.mubr.f32.gmra.mrb[0].mxu0 %v87
  %v307 = vpop.f32.mrb[0].mxu0
  %v308 = vadd.f32 %v58, %v307
  %v309 = vpop.f32.mrb[0].mxu0
  %v310 = vadd.f32 %v62, %v309
  %311 = vmatprep.mubr.f32.mxu0 0.0
  %312 = vmatmul.mubr.f32.gmra.mrb[0].mxu0 %v90
  %v313 = vpop.f32.mrb[0].mxu0
  %v314 = vadd.f32 %v58, %v313
  %v315 = vpop.f32.mrb[0].mxu0
  %v316 = vadd.f32 %v62, %v315
  %317 = vdwg.mxu0
  %318 = vst [vmem:[#allocation2] sm:$0xff] %v159
  %319 = vst [vmem:[#allocation2 + $0x8] sm:$0xff] %v161
  %320 = vst [vmem:[#allocation2 + $0x10] sm:$0xff] %v272
  %321 = vst [vmem:[#allocation2 + $0x18] sm:$0xff] %v274
  %322 = vst [vmem:[#allocation2 + $0x20] sm:$0xff] %v165
  %323 = vst [vmem:[#allocation2 + $0x28] sm:$0xff] %v167
  %324 = vst [vmem:[#allocation2 + $0x30] sm:$0xff] %v278
  %325 = vst [vmem:[#allocation2 + $0x38] sm:$0xff] %v280
  %326 = vst [vmem:[#allocation2 + $0x40] sm:$0xff] %v171
  %327 = vst [vmem:[#allocation2 + $0x48] sm:$0xff] %v173
  %328 = vst [vmem:[#allocation2 + $0x50] sm:$0xff] %v284
  %329 = vst [vmem:[#allocation2 + $0x58] sm:$0xff] %v286
  %330 = vst [vmem:[#allocation2 + $0x60] sm:$0xff] %v177
  %331 = vst [vmem:[#allocation2 + $0x68] sm:$0xff] %v179
  %332 = vst [vmem:[#allocation2 + $0x70] sm:$0xff] %v290
  %333 = vst [vmem:[#allocation2 + $0x78] sm:$0xff] %v292
  %334 = vst [vmem:[#allocation2 + $0x80] sm:$0xff] %v183
  %335 = vst [vmem:[#allocation2 + $0x88] sm:$0xff] %v185
  %336 = vst [vmem:[#allocation2 + $0x90] sm:$0xff] %v296
  %337 = vst [vmem:[#allocation2 + $0x98] sm:$0xff] %v298
  %338 = vst [vmem:[#allocation2 + $0xa0] sm:$0xff] %v189
  %339 = vst [vmem:[#allocation2 + $0xa8] sm:$0xff] %v191
  %340 = vst [vmem:[#allocation2 + $0xb0] sm:$0xff] %v302
  %341 = vst [vmem:[#allocation2 + $0xb8] sm:$0xff] %v304
  %342 = vst [vmem:[#allocation2 + $0xc0] sm:$0xff] %v195
  %343 = vst [vmem:[#allocation2 + $0xc8] sm:$0xff] %v197
  %344 = vst [vmem:[#allocation2 + $0xd0] sm:$0xff] %v308
  %345 = vst [vmem:[#allocation2 + $0xd8] sm:$0xff] %v310
  %346 = vst [vmem:[#allocation2 + $0xe0] sm:$0xff] %v201
  %347 = vst [vmem:[#allocation2 + $0xe8] sm:$0xff] %v203
  %348 = vst [vmem:[#allocation2 + $0xf0] sm:$0xff] %v314
  %349 = vst [vmem:[#allocation2 + $0xf8] sm:$0xff] %v316
  %v350 = vld [vmem:[%s2] sm:$0xff]
  %v351 = vld [vmem:[%s2 + $0x8] sm:$0xff]
  %v352 = vld [vmem:[%s2 + $0x10] sm:$0xff]
  %v353 = vld [vmem:[%s2 + $0x18] sm:$0xff]
  %v354 = vld [vmem:[%s2 + $0x20] sm:$0xff]
  %v355 = vld [vmem:[%s2 + $0x28] sm:$0xff]
  %v356 = vld [vmem:[%s2 + $0x30] sm:$0xff]
  %v357 = vld [vmem:[%s2 + $0x38] sm:$0xff]
  %v358 = vld [vmem:[%s2 + $0x40] sm:$0xff]
  %v359 = vld [vmem:[%s2 + $0x48] sm:$0xff]
  %v360 = vld [vmem:[%s2 + $0x50] sm:$0xff]
  %v361 = vld [vmem:[%s2 + $0x58] sm:$0xff]
  %v362 = vld [vmem:[%s2 + $0x60] sm:$0xff]
  %v363 = vld [vmem:[%s2 + $0x68] sm:$0xff]
  %v364 = vld [vmem:[%s2 + $0x70] sm:$0xff]
  %v365 = vld [vmem:[%s2 + $0x78] sm:$0xff]
  %v366 = vld [vmem:[%s2 + $0x80] sm:$0xff]
  %v367 = vld [vmem:[%s2 + $0x88] sm:$0xff]
  %v368 = vld [vmem:[%s2 + $0x90] sm:$0xff]
  %v369 = vld [vmem:[%s2 + $0x98] sm:$0xff]
  %v370 = vld [vmem:[%s2 + $0xa0] sm:$0xff]
  %v371 = vld [vmem:[%s2 + $0xa8] sm:$0xff]
  %v372 = vld [vmem:[%s2 + $0xb0] sm:$0xff]
  %v373 = vld [vmem:[%s2 + $0xb8] sm:$0xff]
  %v374 = vld [vmem:[%s2 + $0xc0] sm:$0xff]
  %v375 = vld [vmem:[%s2 + $0xc8] sm:$0xff]
  %v376 = vld [vmem:[%s2 + $0xd0] sm:$0xff]
  %v377 = vld [vmem:[%s2 + $0xd8] sm:$0xff]
  %v378 = vld [vmem:[%s2 + $0xe0] sm:$0xff]
  %v379 = vld [vmem:[%s2 + $0xe8] sm:$0xff]
  %v380 = vld [vmem:[%s2 + $0xf0] sm:$0xff]
  %v381 = vld [vmem:[%s2 + $0xf8] sm:$0xff]
  %v382 = vld [vmem:[%s2 + $0x100] sm:$0xff]
  %v383 = vld [vmem:[%s2 + $0x108] sm:$0xff]
  %v384 = vld [vmem:[%s2 + $0x110] sm:$0xff]
  %v385 = vld [vmem:[%s2 + $0x118] sm:$0xff]
  %v386 = vld [vmem:[%s2 + $0x120] sm:$0xff]
  %v387 = vld [vmem:[%s2 + $0x128] sm:$0xff]
  %v388 = vld [vmem:[%s2 + $0x130] sm:$0xff]
  %v389 = vld [vmem:[%s2 + $0x138] sm:$0xff]
  %v390 = vld [vmem:[%s2 + $0x140] sm:$0xff]
  %v391 = vld [vmem:[%s2 + $0x148] sm:$0xff]
  %v392 = vld [vmem:[%s2 + $0x150] sm:$0xff]
  %v393 = vld [vmem:[%s2 + $0x158] sm:$0xff]
  %v394 = vld [vmem:[%s2 + $0x160] sm:$0xff]
  %v395 = vld [vmem:[%s2 + $0x168] sm:$0xff]
  %v396 = vld [vmem:[%s2 + $0x170] sm:$0xff]
  %v397 = vld [vmem:[%s2 + $0x178] sm:$0xff]
  %v398 = vld [vmem:[%s2 + $0x180] sm:$0xff]
  %v399 = vld [vmem:[%s2 + $0x188] sm:$0xff]
  %v400 = vld [vmem:[%s2 + $0x190] sm:$0xff]
  %v401 = vld [vmem:[%s2 + $0x198] sm:$0xff]
  %v402 = vld [vmem:[%s2 + $0x1a0] sm:$0xff]
  %v403 = vld [vmem:[%s2 + $0x1a8] sm:$0xff]
  %v404 = vld [vmem:[%s2 + $0x1b0] sm:$0xff]
  %v405 = vld [vmem:[%s2 + $0x1b8] sm:$0xff]
  %v406 = vld [vmem:[%s2 + $0x1c0] sm:$0xff]
  %v407 = vld [vmem:[%s2 + $0x1c8] sm:$0xff]
  %v408 = vld [vmem:[%s2 + $0x1d0] sm:$0xff]
  %v409 = vld [vmem:[%s2 + $0x1d8] sm:$0xff]
  %v410 = vld [vmem:[%s2 + $0x1e0] sm:$0xff]
  %v411 = vld [vmem:[%s2 + $0x1e8] sm:$0xff]
  %v412 = vld [vmem:[%s2 + $0x1f0] sm:$0xff]
  %v413 = vld [vmem:[%s2 + $0x1f8] sm:$0xff]
  %v414 = vld [vmem:[#allocation4] sm:$0xff]
  %v415 = vld [vmem:[#allocation5] sm:$0xff]
  %s416 = smul.u32 0, 4
  %s417 = smul.addr %s416, 8
  %s418 = scalar_lea.vmem [#allocation2], %s417
  %v419 = vld [vmem:[%s418] sm:$0xff]
  %v420 = vld [vmem:[%s418 + $0x8] sm:$0xff]
  %v421 = vld [vmem:[%s418 + $0x10] sm:$0xff]
  %v422 = vld [vmem:[%s418 + $0x18] sm:$0xff]
  %423 = vmatprep.subr.mxu0 %v351
  %424 = vmatpush1.msra.mxu0 %v350
  %425 = vmatprep.subr.mxu0 %v355
  %426 = vmatpush1.msra.mxu0 %v354
  %427 = vmatprep.subr.mxu0 %v359
  %428 = vmatpush1.msra.mxu0 %v358
  %429 = vmatprep.subr.mxu0 %v363
  %430 = vmatpush1.msra.mxu0 %v362
  %431 = vmatprep.subr.mxu0 %v367
  %432 = vmatpush1.msra.mxu0 %v366
  %433 = vmatprep.subr.mxu0 %v371
  %434 = vmatpush1.msra.mxu0 %v370
  %435 = vmatprep.subr.mxu0 %v375
  %436 = vmatpush1.msra.mxu0 %v374
  %437 = vmatprep.subr.mxu0 %v379
  %438 = vmatpush1.msra.mxu0 %v378
  %439 = vmatprep.subr.mxu0 %v383
  %440 = vmatpush1.msra.mxu0 %v382
  %441 = vmatprep.subr.mxu0 %v387
  %442 = vmatpush1.msra.mxu0 %v386
  %443 = vmatprep.subr.mxu0 %v391
  %444 = vmatpush1.msra.mxu0 %v390
  %445 = vmatprep.subr.mxu0 %v395
  %446 = vmatpush1.msra.mxu0 %v394
  %447 = vmatprep.subr.mxu0 %v399
  %448 = vmatpush1.msra.mxu0 %v398
  %449 = vmatprep.subr.mxu0 %v403
  %450 = vmatpush1.msra.mxu0 %v402
  %451 = vmatprep.subr.mxu0 %v407
  %452 = vmatpush1.msra.mxu0 %v406
  %453 = vmatprep.subr.mxu0 %v411
  %454 = vmatpush1.msra.mxu0 %v410
  %455 = vmatprep.subr.mxu0 0.0
  %456 = vmatpush1.msra.mxu0 0.0
  %457 = vmatprep.subr.mxu0 0.0
  %458 = vmatpush1.msra.mxu0 0.0
  %459 = vmatprep.subr.mxu0 0.0
  %460 = vmatpush1.msra.mxu0 0.0
  %461 = vmatprep.subr.mxu0 0.0
  %462 = vmatpush1.msra.mxu0 0.0
  %463 = vmatprep.subr.mxu0 0.0
  %464 = vmatpush1.msra.mxu0 0.0
  %465 = vmatprep.subr.mxu0 0.0
  %466 = vmatpush1.msra.mxu0 0.0
  %467 = vmatprep.subr.mxu0 0.0
  %468 = vmatpush1.msra.mxu0 0.0
  %469 = vmatprep.subr.mxu0 0.0
  %470 = vmatpush1.msra.mxu0 0.0
  %471 = vmatprep.subr.mxu0 0.0
  %472 = vmatpush1.msra.mxu0 0.0
  %473 = vmatprep.subr.mxu0 0.0
  %474 = vmatpush1.msra.mxu0 0.0
  %475 = vmatprep.subr.mxu0 0.0
  %476 = vmatpush1.msra.mxu0 0.0
  %477 = vmatprep.subr.mxu0 0.0
  %478 = vmatpush1.msra.mxu0 0.0
  %479 = vmatprep.subr.mxu0 0.0
  %480 = vmatpush1.msra.mxu0 0.0
  %481 = vmatprep.subr.mxu0 0.0
  %482 = vmatpush1.msra.mxu0 0.0
  %483 = vmatprep.subr.mxu0 0.0
  %484 = vmatpush1.msra.mxu0 0.0
  %485 = vmatprep.subr.mxu0 0.0
  %486 = vmatpush1.msra.mxu0 0.0
  %487 = vmatprep.mubr.f32.mxu0 0.0
  %488 = vmatmul.mubr.f32.gmra.mrb[0].mxu0 %v414
  %v489 = vpop.f32.mrb[0].mxu0
  %v490 = vadd.f32 0.0, %v489
  %v491 = vpop.f32.mrb[0].mxu0
  %v492 = vadd.f32 0.0, %v491
  %493 = vdwg.mxu0
  %494 = vmatprep.subr.mxu0 %v353
  %495 = vmatpush1.msra.mxu0 %v352
  %496 = vmatprep.subr.mxu0 %v357
  %497 = vmatpush1.msra.mxu0 %v356
  %498 = vmatprep.subr.mxu0 %v361
  %499 = vmatpush1.msra.mxu0 %v360
  %500 = vmatprep.subr.mxu0 %v365
  %501 = vmatpush1.msra.mxu0 %v364
  %502 = vmatprep.subr.mxu0 %v369
  %503 = vmatpush1.msra.mxu0 %v368
  %504 = vmatprep.subr.mxu0 %v373
  %505 = vmatpush1.msra.mxu0 %v372
  %506 = vmatprep.subr.mxu0 %v377
  %507 = vmatpush1.msra.mxu0 %v376
  %508 = vmatprep.subr.mxu0 %v381
  %509 = vmatpush1.msra.mxu0 %v380
  %510 = vmatprep.subr.mxu0 %v385
  %511 = vmatpush1.msra.mxu0 %v384
  %512 = vmatprep.subr.mxu0 %v389
  %513 = vmatpush1.msra.mxu0 %v388
  %514 = vmatprep.subr.mxu0 %v393
  %515 = vmatpush1.msra.mxu0 %v392
  %516 = vmatprep.subr.mxu0 %v397
  %517 = vmatpush1.msra.mxu0 %v396
  %518 = vmatprep.subr.mxu0 %v401
  %519 = vmatpush1.msra.mxu0 %v400
  %520 = vmatprep.subr.mxu0 %v405
  %521 = vmatpush1.msra.mxu0 %v404
  %522 = vmatprep.subr.mxu0 %v409
  %523 = vmatpush1.msra.mxu0 %v408
  %524 = vmatprep.subr.mxu0 %v413
  %525 = vmatpush1.msra.mxu0 %v412
  %526 = vmatprep.subr.mxu0 0.0
  %527 = vmatpush1.msra.mxu0 0.0
  %528 = vmatprep.subr.mxu0 0.0
  %529 = vmatpush1.msra.mxu0 0.0
  %530 = vmatprep.subr.mxu0 0.0
  %531 = vmatpush1.msra.mxu0 0.0
  %532 = vmatprep.subr.mxu0 0.0
  %533 = vmatpush1.msra.mxu0 0.0
  %534 = vmatprep.subr.mxu0 0.0
  %535 = vmatpush1.msra.mxu0 0.0
  %536 = vmatprep.subr.mxu0 0.0
  %537 = vmatpush1.msra.mxu0 0.0
  %538 = vmatprep.subr.mxu0 0.0
  %539 = vmatpush1.msra.mxu0 0.0
  %540 = vmatprep.subr.mxu0 0.0
  %541 = vmatpush1.msra.mxu0 0.0
  %542 = vmatprep.subr.mxu0 0.0
  %543 = vmatpush1.msra.mxu0 0.0
  %544 = vmatprep.subr.mxu0 0.0
  %545 = vmatpush1.msra.mxu0 0.0
  %546 = vmatprep.subr.mxu0 0.0
  %547 = vmatpush1.msra.mxu0 0.0
  %548 = vmatprep.subr.mxu0 0.0
  %549 = vmatpush1.msra.mxu0 0.0
  %550 = vmatprep.subr.mxu0 0.0
  %551 = vmatpush1.msra.mxu0 0.0
  %552 = vmatprep.subr.mxu0 0.0
  %553 = vmatpush1.msra.mxu0 0.0
  %554 = vmatprep.subr.mxu0 0.0
  %555 = vmatpush1.msra.mxu0 0.0
  %556 = vmatprep.subr.mxu0 0.0
  %557 = vmatpush1.msra.mxu0 0.0
  %558 = vmatprep.mubr.f32.mxu0 0.0
  %559 = vmatmul.mubr.f32.gmra.mrb[0].mxu0 %v414
  %v560 = vpop.f32.mrb[0].mxu0
  %v561 = vadd.f32 0.0, %v560
  %v562 = vpop.f32.mrb[0].mxu0
  %v563 = vadd.f32 0.0, %v562
  %564 = vdwg.mxu0
  %v565 = vadd.f32 %v419, %v490
  %v566 = vadd.f32 %v420, %v492
  %v567 = vadd.f32 %v421, %v561
  %v568 = vadd.f32 %v422, %v563
  %v569 = vxor.u32 %v565, 2147483648
  %v570 = vmul.f32 %v569, 1.442695
  %v571 = vpow.pop %v570
  %v572 = vadd.f32 %v571, 1.0
  %v573 = vrcp.pop %v572
  %v574 = vmul.f32 1.0, %v573
  %v575 = vxor.u32 %v566, 2147483648
  %v576 = vmul.f32 %v575, 1.442695
  %v577 = vpow.pop %v576
  %v578 = vadd.f32 %v577, 1.0
  %v579 = vrcp.pop %v578
  %v580 = vmul.f32 1.0, %v579
  %v581 = vxor.u32 %v567, 2147483648
  %v582 = vmul.f32 %v581, 1.442695
  %v583 = vpow.pop %v582
  %v584 = vadd.f32 %v583, 1.0
  %v585 = vrcp.pop %v584
  %v586 = vmul.f32 1.0, %v585
  %v587 = vtanh.pop %v568
  %v588 = vmul.f32 %v580, %v415
  %v589 = vmul.f32 %v574, %v587
  %v590 = vadd.f32 %v588, %v589
  %v591 = vtanh.pop %v590
  %v592 = vmul.f32 %v586, %v591
  %593 = vst [vmem:[#allocation3] sm:$0xff] %v592
  %s594 = smul.u32 1, 4
  %s595 = smul.addr %s594, 8
  %s596 = scalar_lea.vmem [#allocation2], %s595
  %v597 = vld [vmem:[%s596] sm:$0xff]
  %v598 = vld [vmem:[%s596 + $0x8] sm:$0xff]
  %v599 = vld [vmem:[%s596 + $0x10] sm:$0xff]
  %v600 = vld [vmem:[%s596 + $0x18] sm:$0xff]
  %601 = vmatprep.subr.mxu0 %v351
  %602 = vmatpush1.msra.mxu0 %v350
  %603 = vmatprep.subr.mxu0 %v355
  %604 = vmatpush1.msra.mxu0 %v354
  %605 = vmatprep.subr.mxu0 %v359
  %606 = vmatpush1.msra.mxu0 %v358
  %607 = vmatprep.subr.mxu0 %v363
  %608 = vmatpush1.msra.mxu0 %v362
  %609 = vmatprep.subr.mxu0 %v367
  %610 = vmatpush1.msra.mxu0 %v366
  %611 = vmatprep.subr.mxu0 %v371
  %612 = vmatpush1.msra.mxu0 %v370
  %613 = vmatprep.subr.mxu0 %v375
  %614 = vmatpush1.msra.mxu0 %v374
  %615 = vmatprep.subr.mxu0 %v379
  %616 = vmatpush1.msra.mxu0 %v378
  %617 = vmatprep.subr.mxu0 %v383
  %618 = vmatpush1.msra.mxu0 %v382
  %619 = vmatprep.subr.mxu0 %v387
  %620 = vmatpush1.msra.mxu0 %v386
  %621 = vmatprep.subr.mxu0 %v391
  %622 = vmatpush1.msra.mxu0 %v390
  %623 = vmatprep.subr.mxu0 %v395
  %624 = vmatpush1.msra.mxu0 %v394
  %625 = vmatprep.subr.mxu0 %v399
  %626 = vmatpush1.msra.mxu0 %v398
  %627 = vmatprep.subr.mxu0 %v403
  %628 = vmatpush1.msra.mxu0 %v402
  %629 = vmatprep.subr.mxu0 %v407
  %630 = vmatpush1.msra.mxu0 %v406
  %631 = vmatprep.subr.mxu0 %v411
  %632 = vmatpush1.msra.mxu0 %v410
  %633 = vmatprep.subr.mxu0 0.0
  %634 = vmatpush1.msra.mxu0 0.0
  %635 = vmatprep.subr.mxu0 0.0
  %636 = vmatpush1.msra.mxu0 0.0
  %637 = vmatprep.subr.mxu0 0.0
  %638 = vmatpush1.msra.mxu0 0.0
  %639 = vmatprep.subr.mxu0 0.0
  %640 = vmatpush1.msra.mxu0 0.0
  %641 = vmatprep.subr.mxu0 0.0
  %642 = vmatpush1.msra.mxu0 0.0
  %643 = vmatprep.subr.mxu0 0.0
  %644 = vmatpush1.msra.mxu0 0.0
  %645 = vmatprep.subr.mxu0 0.0
  %646 = vmatpush1.msra.mxu0 0.0
  %647 = vmatprep.subr.mxu0 0.0
  %648 = vmatpush1.msra.mxu0 0.0
  %649 = vmatprep.subr.mxu0 0.0
  %650 = vmatpush1.msra.mxu0 0.0
  %651 = vmatprep.subr.mxu0 0.0
  %652 = vmatpush1.msra.mxu0 0.0
  %653 = vmatprep.subr.mxu0 0.0
  %654 = vmatpush1.msra.mxu0 0.0
  %655 = vmatprep.subr.mxu0 0.0
  %656 = vmatpush1.msra.mxu0 0.0
  %657 = vmatprep.subr.mxu0 0.0
  %658 = vmatpush1.msra.mxu0 0.0
  %659 = vmatprep.subr.mxu0 0.0
  %660 = vmatpush1.msra.mxu0 0.0
  %661 = vmatprep.subr.mxu0 0.0
  %662 = vmatpush1.msra.mxu0 0.0
  %663 = vmatprep.subr.mxu0 0.0
  %664 = vmatpush1.msra.mxu0 0.0
  %665 = vmatprep.mubr.f32.mxu0 0.0
  %666 = vmatmul.mubr.f32.gmra.mrb[0].mxu0 %v592
  %v667 = vpop.f32.mrb[0].mxu0
  %v668 = vadd.f32 0.0, %v667
  %v669 = vpop.f32.mrb[0].mxu0
  %v670 = vadd.f32 0.0, %v669
  %671 = vdwg.mxu0
  %672 = vmatprep.subr.mxu0 %v353
  %673 = vmatpush1.msra.mxu0 %v352
  %674 = vmatprep.subr.mxu0 %v357
  %675 = vmatpush1.msra.mxu0 %v356
  %676 = vmatprep.subr.mxu0 %v361
  %677 = vmatpush1.msra.mxu0 %v360
  %678 = vmatprep.subr.mxu0 %v365
  %679 = vmatpush1.msra.mxu0 %v364
  %680 = vmatprep.subr.mxu0 %v369
  %681 = vmatpush1.msra.mxu0 %v368
  %682 = vmatprep.subr.mxu0 %v373
  %683 = vmatpush1.msra.mxu0 %v372
  %684 = vmatprep.subr.mxu0 %v377
  %685 = vmatpush1.msra.mxu0 %v376
  %686 = vmatprep.subr.mxu0 %v381
  %687 = vmatpush1.msra.mxu0 %v380
  %688 = vmatprep.subr.mxu0 %v385
  %689 = vmatpush1.msra.mxu0 %v384
  %690 = vmatprep.subr.mxu0 %v389
  %691 = vmatpush1.msra.mxu0 %v388
  %692 = vmatprep.subr.mxu0 %v393
  %693 = vmatpush1.msra.mxu0 %v392
  %694 = vmatprep.subr.mxu0 %v397
  %695 = vmatpush1.msra.mxu0 %v396
  %696 = vmatprep.subr.mxu0 %v401
  %697 = vmatpush1.msra.mxu0 %v400
  %698 = vmatprep.subr.mxu0 %v405
  %699 = vmatpush1.msra.mxu0 %v404
  %700 = vmatprep.subr.mxu0 %v409
  %701 = vmatpush1.msra.mxu0 %v408
  %702 = vmatprep.subr.mxu0 %v413
  %703 = vmatpush1.msra.mxu0 %v412
  %704 = vmatprep.subr.mxu0 0.0
  %705 = vmatpush1.msra.mxu0 0.0
  %706 = vmatprep.subr.mxu0 0.0
  %707 = vmatpush1.msra.mxu0 0.0
  %708 = vmatprep.subr.mxu0 0.0
  %709 = vmatpush1.msra.mxu0 0.0
  %710 = vmatprep.subr.mxu0 0.0
  %711 = vmatpush1.msra.mxu0 0.0
  %712 = vmatprep.subr.mxu0 0.0
  %713 = vmatpush1.msra.mxu0 0.0
  %714 = vmatprep.subr.mxu0 0.0
  %715 = vmatpush1.msra.mxu0 0.0
  %716 = vmatprep.subr.mxu0 0.0
  %717 = vmatpush1.msra.mxu0 0.0
  %718 = vmatprep.subr.mxu0 0.0
  %719 = vmatpush1.msra.mxu0 0.0
  %720 = vmatprep.subr.mxu0 0.0
  %721 = vmatpush1.msra.mxu0 0.0
  %722 = vmatprep.subr.mxu0 0.0
  %723 = vmatpush1.msra.mxu0 0.0
  %724 = vmatprep.subr.mxu0 0.0
  %725 = vmatpush1.msra.mxu0 0.0
  %726 = vmatprep.subr.mxu0 0.0
  %727 = vmatpush1.msra.mxu0 0.0
  %728 = vmatprep.subr.mxu0 0.0
  %729 = vmatpush1.msra.mxu0 0.0
  %730 = vmatprep.subr.mxu0 0.0
  %731 = vmatpush1.msra.mxu0 0.0
  %732 = vmatprep.subr.mxu0 0.0
  %733 = vmatpush1.msra.mxu0 0.0
  %734 = vmatprep.subr.mxu0 0.0
  %735 = vmatpush1.msra.mxu0 0.0
  %736 = vmatprep.mubr.f32.mxu0 0.0
  %737 = vmatmul.mubr.f32.gmra.mrb[0].mxu0 %v592
  %v738 = vpop.f32.mrb[0].mxu0
  %v739 = vadd.f32 0.0, %v738
  %v740 = vpop.f32.mrb[0].mxu0
  %v741 = vadd.f32 0.0, %v740
  %742 = vdwg.mxu0
  %v743 = vadd.f32 %v597, %v668
  %v744 = vadd.f32 %v598, %v670
  %v745 = vadd.f32 %v599, %v739
  %v746 = vadd.f32 %v600, %v741
  %v747 = vxor.u32 %v743, 2147483648
  %v748 = vmul.f32 %v747, 1.442695
  %v749 = vpow.pop %v748
  %v750 = vadd.f32 %v749, 1.0
  %v751 = vrcp.pop %v750
  %v752 = vmul.f32 1.0, %v751
  %v753 = vxor.u32 %v744, 2147483648
  %v754 = vmul.f32 %v753, 1.442695
  %v755 = vpow.pop %v754
  %v756 = vadd.f32 %v755, 1.0
  %v757 = vrcp.pop %v756
  %v758 = vmul.f32 1.0, %v757
  %v759 = vxor.u32 %v745, 2147483648
  %v760 = vmul.f32 %v759, 1.442695
  %v761 = vpow.pop %v760
  %v762 = vadd.f32 %v761, 1.0
  %v763 = vrcp.pop %v762
  %v764 = vmul.f32 1.0, %v763
  %v765 = vtanh.pop %v746
  %v766 = vmul.f32 %v758, %v590
  %v767 = vmul.f32 %v752, %v765
  %v768 = vadd.f32 %v766, %v767
  %v769 = vtanh.pop %v768
  %v770 = vmul.f32 %v764, %v769
  %s771 = scalar_lea.vmem [#allocation3], 8
  %772 = vst [vmem:[%s771] sm:$0xff] %v770
  %s773 = smul.u32 2, 4
  %s774 = smul.addr %s773, 8
  %s775 = scalar_lea.vmem [#allocation2], %s774
  %v776 = vld [vmem:[%s775] sm:$0xff]
  %v777 = vld [vmem:[%s775 + $0x8] sm:$0xff]
  %v778 = vld [vmem:[%s775 + $0x10] sm:$0xff]
  %v779 = vld [vmem:[%s775 + $0x18] sm:$0xff]
  %780 = vmatprep.subr.mxu0 %v351
  %781 = vmatpush1.msra.mxu0 %v350
  %782 = vmatprep.subr.mxu0 %v355
  %783 = vmatpush1.msra.mxu0 %v354
  %784 = vmatprep.subr.mxu0 %v359
  %785 = vmatpush1.msra.mxu0 %v358
  %786 = vmatprep.subr.mxu0 %v363
  %787 = vmatpush1.msra.mxu0 %v362
  %788 = vmatprep.subr.mxu0 %v367
  %789 = vmatpush1.msra.mxu0 %v366
  %790 = vmatprep.subr.mxu0 %v371
  %791 = vmatpush1.msra.mxu0 %v370
  %792 = vmatprep.subr.mxu0 %v375
  %793 = vmatpush1.msra.mxu0 %v374
  %794 = vmatprep.subr.mxu0 %v379
  %795 = vmatpush1.msra.mxu0 %v378
  %796 = vmatprep.subr.mxu0 %v383
  %797 = vmatpush1.msra.mxu0 %v382
  %798 = vmatprep.subr.mxu0 %v387
  %799 = vmatpush1.msra.mxu0 %v386
  %800 = vmatprep.subr.mxu0 %v391
  %801 = vmatpush1.msra.mxu0 %v390
  %802 = vmatprep.subr.mxu0 %v395
  %803 = vmatpush1.msra.mxu0 %v394
  %804 = vmatprep.subr.mxu0 %v399
  %805 = vmatpush1.msra.mxu0 %v398
  %806 = vmatprep.subr.mxu0 %v403
  %807 = vmatpush1.msra.mxu0 %v402
  %808 = vmatprep.subr.mxu0 %v407
  %809 = vmatpush1.msra.mxu0 %v406
  %810 = vmatprep.subr.mxu0 %v411
  %811 = vmatpush1.msra.mxu0 %v410
  %812 = vmatprep.subr.mxu0 0.0
  %813 = vmatpush1.msra.mxu0 0.0
  %814 = vmatprep.subr.mxu0 0.0
  %815 = vmatpush1.msra.mxu0 0.0
  %816 = vmatprep.subr.mxu0 0.0
  %817 = vmatpush1.msra.mxu0 0.0
  %818 = vmatprep.subr.mxu0 0.0
  %819 = vmatpush1.msra.mxu0 0.0
  %820 = vmatprep.subr.mxu0 0.0
  %821 = vmatpush1.msra.mxu0 0.0
  %822 = vmatprep.subr.mxu0 0.0
  %823 = vmatpush1.msra.mxu0 0.0
  %824 = vmatprep.subr.mxu0 0.0
  %825 = vmatpush1.msra.mxu0 0.0
  %826 = vmatprep.subr.mxu0 0.0
  %827 = vmatpush1.msra.mxu0 0.0
  %828 = vmatprep.subr.mxu0 0.0
  %829 = vmatpush1.msra.mxu0 0.0
  %830 = vmatprep.subr.mxu0 0.0
  %831 = vmatpush1.msra.mxu0 0.0
  %832 = vmatprep.subr.mxu0 0.0
  %833 = vmatpush1.msra.mxu0 0.0
  %834 = vmatprep.subr.mxu0 0.0
  %835 = vmatpush1.msra.mxu0 0.0
  %836 = vmatprep.subr.mxu0 0.0
  %837 = vmatpush1.msra.mxu0 0.0
  %838 = vmatprep.subr.mxu0 0.0
  %839 = vmatpush1.msra.mxu0 0.0
  %840 = vmatprep.subr.mxu0 0.0
  %841 = vmatpush1.msra.mxu0 0.0
  %842 = vmatprep.subr.mxu0 0.0
  %843 = vmatpush1.msra.mxu0 0.0
  %844 = vmatprep.mubr.f32.mxu0 0.0
  %845 = vmatmul.mubr.f32.gmra.mrb[0].mxu0 %v770
  %v846 = vpop.f32.mrb[0].mxu0
  %v847 = vadd.f32 0.0, %v846
  %v848 = vpop.f32.mrb[0].mxu0
  %v849 = vadd.f32 0.0, %v848
  %850 = vdwg.mxu0
  %851 = vmatprep.subr.mxu0 %v353
  %852 = vmatpush1.msra.mxu0 %v352
  %853 = vmatprep.subr.mxu0 %v357
  %854 = vmatpush1.msra.mxu0 %v356
  %855 = vmatprep.subr.mxu0 %v361
  %856 = vmatpush1.msra.mxu0 %v360
  %857 = vmatprep.subr.mxu0 %v365
  %858 = vmatpush1.msra.mxu0 %v364
  %859 = vmatprep.subr.mxu0 %v369
  %860 = vmatpush1.msra.mxu0 %v368
  %861 = vmatprep.subr.mxu0 %v373
  %862 = vmatpush1.msra.mxu0 %v372
  %863 = vmatprep.subr.mxu0 %v377
  %864 = vmatpush1.msra.mxu0 %v376
  %865 = vmatprep.subr.mxu0 %v381
  %866 = vmatpush1.msra.mxu0 %v380
  %867 = vmatprep.subr.mxu0 %v385
  %868 = vmatpush1.msra.mxu0 %v384
  %869 = vmatprep.subr.mxu0 %v389
  %870 = vmatpush1.msra.mxu0 %v388
  %871 = vmatprep.subr.mxu0 %v393
  %872 = vmatpush1.msra.mxu0 %v392
  %873 = vmatprep.subr.mxu0 %v397
  %874 = vmatpush1.msra.mxu0 %v396
  %875 = vmatprep.subr.mxu0 %v401
  %876 = vmatpush1.msra.mxu0 %v400
  %877 = vmatprep.subr.mxu0 %v405
  %878 = vmatpush1.msra.mxu0 %v404
  %879 = vmatprep.subr.mxu0 %v409
  %880 = vmatpush1.msra.mxu0 %v408
  %881 = vmatprep.subr.mxu0 %v413
  %882 = vmatpush1.msra.mxu0 %v412
  %883 = vmatprep.subr.mxu0 0.0
  %884 = vmatpush1.msra.mxu0 0.0
  %885 = vmatprep.subr.mxu0 0.0
  %886 = vmatpush1.msra.mxu0 0.0
  %887 = vmatprep.subr.mxu0 0.0
  %888 = vmatpush1.msra.mxu0 0.0
  %889 = vmatprep.subr.mxu0 0.0
  %890 = vmatpush1.msra.mxu0 0.0
  %891 = vmatprep.subr.mxu0 0.0
  %892 = vmatpush1.msra.mxu0 0.0
  %893 = vmatprep.subr.mxu0 0.0
  %894 = vmatpush1.msra.mxu0 0.0
  %895 = vmatprep.subr.mxu0 0.0
  %896 = vmatpush1.msra.mxu0 0.0
  %897 = vmatprep.subr.mxu0 0.0
  %898 = vmatpush1.msra.mxu0 0.0
  %899 = vmatprep.subr.mxu0 0.0
  %900 = vmatpush1.msra.mxu0 0.0
  %901 = vmatprep.subr.mxu0 0.0
  %902 = vmatpush1.msra.mxu0 0.0
  %903 = vmatprep.subr.mxu0 0.0
  %904 = vmatpush1.msra.mxu0 0.0
  %905 = vmatprep.subr.mxu0 0.0
  %906 = vmatpush1.msra.mxu0 0.0
  %907 = vmatprep.subr.mxu0 0.0
  %908 = vmatpush1.msra.mxu0 0.0
  %909 = vmatprep.subr.mxu0 0.0
  %910 = vmatpush1.msra.mxu0 0.0
  %911 = vmatprep.subr.mxu0 0.0
  %912 = vmatpush1.msra.mxu0 0.0
  %913 = vmatprep.subr.mxu0 0.0
  %914 = vmatpush1.msra.mxu0 0.0
  %915 = vmatprep.mubr.f32.mxu0 0.0
  %916 = vmatmul.mubr.f32.gmra.mrb[0].mxu0 %v770
  %v917 = vpop.f32.mrb[0].mxu0
  %v918 = vadd.f32 0.0, %v917
  %v919 = vpop.f32.mrb[0].mxu0
  %v920 = vadd.f32 0.0, %v919
  %921 = vdwg.mxu0
  %v922 = vadd.f32 %v776, %v847
  %v923 = vadd.f32 %v777, %v849
  %v924 = vadd.f32 %v778, %v918
  %v925 = vadd.f32 %v779, %v920
  %v926 = vxor.u32 %v922, 2147483648
  %v927 = vmul.f32 %v926, 1.442695
  %v928 = vpow.pop %v927
  %v929 = vadd.f32 %v928, 1.0
  %v930 = vrcp.pop %v929
  %v931 = vmul.f32 1.0, %v930
  %v932 = vxor.u32 %v923, 2147483648
  %v933 = vmul.f32 %v932, 1.442695
  %v934 = vpow.pop %v933
  %v935 = vadd.f32 %v934, 1.0
  %v936 = vrcp.pop %v935
  %v937 = vmul.f32 1.0, %v936
  %v938 = vxor.u32 %v924, 2147483648
  %v939 = vmul.f32 %v938, 1.442695
  %v940 = vpow.pop %v939
  %v941 = vadd.f32 %v940, 1.0
  %v942 = vrcp.pop %v941
  %v943 = vmul.f32 1.0, %v942
  %v944 = vtanh.pop %v925
  %v945 = vmul.f32 %v937, %v768
  %v946 = vmul.f32 %v931, %v944
  %v947 = vadd.f32 %v945, %v946
  %v948 = vtanh.pop %v947
  %v949 = vmul.f32 %v943, %v948
  %s950 = scalar_lea.vmem [#allocation3], 16
  %951 = vst [vmem:[%s950] sm:$0xff] %v949
  %s952 = smul.u32 3, 4
  %s953 = smul.addr %s952, 8
  %s954 = scalar_lea.vmem [#allocation2], %s953
  %v955 = vld [vmem:[%s954] sm:$0xff]
  %v956 = vld [vmem:[%s954 + $0x8] sm:$0xff]
  %v957 = vld [vmem:[%s954 + $0x10] sm:$0xff]
  %v958 = vld [vmem:[%s954 + $0x18] sm:$0xff]
  %959 = vmatprep.subr.mxu0 %v351
  %960 = vmatpush1.msra.mxu0 %v350
  %961 = vmatprep.subr.mxu0 %v355
  %962 = vmatpush1.msra.mxu0 %v354
  %963 = vmatprep.subr.mxu0 %v359
  %964 = vmatpush1.msra.mxu0 %v358
  %965 = vmatprep.subr.mxu0 %v363
  %966 = vmatpush1.msra.mxu0 %v362
  %967 = vmatprep.subr.mxu0 %v367
  %968 = vmatpush1.msra.mxu0 %v366
  %969 = vmatprep.subr.mxu0 %v371
  %970 = vmatpush1.msra.mxu0 %v370
  %971 = vmatprep.subr.mxu0 %v375
  %972 = vmatpush1.msra.mxu0 %v374
  %973 = vmatprep.subr.mxu0 %v379
  %974 = vmatpush1.msra.mxu0 %v378
  %975 = vmatprep.subr.mxu0 %v383
  %976 = vmatpush1.msra.mxu0 %v382
  %977 = vmatprep.subr.mxu0 %v387
  %978 = vmatpush1.msra.mxu0 %v386
  %979 = vmatprep.subr.mxu0 %v391
  %980 = vmatpush1.msra.mxu0 %v390
  %981 = vmatprep.subr.mxu0 %v395
  %982 = vmatpush1.msra.mxu0 %v394
  %983 = vmatprep.subr.mxu0 %v399
  %984 = vmatpush1.msra.mxu0 %v398
  %985 = vmatprep.subr.mxu0 %v403
  %986 = vmatpush1.msra.mxu0 %v402
  %987 = vmatprep.subr.mxu0 %v407
  %988 = vmatpush1.msra.mxu0 %v406
  %989 = vmatprep.subr.mxu0 %v411
  %990 = vmatpush1.msra.mxu0 %v410
  %991 = vmatprep.subr.mxu0 0.0
  %992 = vmatpush1.msra.mxu0 0.0
  %993 = vmatprep.subr.mxu0 0.0
  %994 = vmatpush1.msra.mxu0 0.0
  %995 = vmatprep.subr.mxu0 0.0
  %996 = vmatpush1.msra.mxu0 0.0
  %997 = vmatprep.subr.mxu0 0.0
  %998 = vmatpush1.msra.mxu0 0.0
  %999 = vmatprep.subr.mxu0 0.0
  %1000 = vmatpush1.msra.mxu0 0.0
  %1001 = vmatprep.subr.mxu0 0.0
  %1002 = vmatpush1.msra.mxu0 0.0
  %1003 = vmatprep.subr.mxu0 0.0
  %1004 = vmatpush1.msra.mxu0 0.0
  %1005 = vmatprep.subr.mxu0 0.0
  %1006 = vmatpush1.msra.mxu0 0.0
  %1007 = vmatprep.subr.mxu0 0.0
  %1008 = vmatpush1.msra.mxu0 0.0
  %1009 = vmatprep.subr.mxu0 0.0
  %1010 = vmatpush1.msra.mxu0 0.0
  %1011 = vmatprep.subr.mxu0 0.0
  %1012 = vmatpush1.msra.mxu0 0.0
  %1013 = vmatprep.subr.mxu0 0.0
  %1014 = vmatpush1.msra.mxu0 0.0
  %1015 = vmatprep.subr.mxu0 0.0
  %1016 = vmatpush1.msra.mxu0 0.0
  %1017 = vmatprep.subr.mxu0 0.0
  %1018 = vmatpush1.msra.mxu0 0.0
  %1019 = vmatprep.subr.mxu0 0.0
  %1020 = vmatpush1.msra.mxu0 0.0
  %1021 = vmatprep.subr.mxu0 0.0
  %1022 = vmatpush1.msra.mxu0 0.0
  %1023 = vmatprep.mubr.f32.mxu0 0.0
  %1024 = vmatmul.mubr.f32.gmra.mrb[0].mxu0 %v949
  %v1025 = vpop.f32.mrb[0].mxu0
  %v1026 = vadd.f32 0.0, %v1025
  %v1027 = vpop.f32.mrb[0].mxu0
  %v1028 = vadd.f32 0.0, %v1027
  %1029 = vdwg.mxu0
  %1030 = vmatprep.subr.mxu0 %v353
  %1031 = vmatpush1.msra.mxu0 %v352
  %1032 = vmatprep.subr.mxu0 %v357
  %1033 = vmatpush1.msra.mxu0 %v356
  %1034 = vmatprep.subr.mxu0 %v361
  %1035 = vmatpush1.msra.mxu0 %v360
  %1036 = vmatprep.subr.mxu0 %v365
  %1037 = vmatpush1.msra.mxu0 %v364
  %1038 = vmatprep.subr.mxu0 %v369
  %1039 = vmatpush1.msra.mxu0 %v368
  %1040 = vmatprep.subr.mxu0 %v373
  %1041 = vmatpush1.msra.mxu0 %v372
  %1042 = vmatprep.subr.mxu0 %v377
  %1043 = vmatpush1.msra.mxu0 %v376
  %1044 = vmatprep.subr.mxu0 %v381
  %1045 = vmatpush1.msra.mxu0 %v380
  %1046 = vmatprep.subr.mxu0 %v385
  %1047 = vmatpush1.msra.mxu0 %v384
  %1048 = vmatprep.subr.mxu0 %v389
  %1049 = vmatpush1.msra.mxu0 %v388
  %1050 = vmatprep.subr.mxu0 %v393
  %1051 = vmatpush1.msra.mxu0 %v392
  %1052 = vmatprep.subr.mxu0 %v397
  %1053 = vmatpush1.msra.mxu0 %v396
  %1054 = vmatprep.subr.mxu0 %v401
  %1055 = vmatpush1.msra.mxu0 %v400
  %1056 = vmatprep.subr.mxu0 %v405
  %1057 = vmatpush1.msra.mxu0 %v404
  %1058 = vmatprep.subr.mxu0 %v409
  %1059 = vmatpush1.msra.mxu0 %v408
  %1060 = vmatprep.subr.mxu0 %v413
  %1061 = vmatpush1.msra.mxu0 %v412
  %1062 = vmatprep.subr.mxu0 0.0
  %1063 = vmatpush1.msra.mxu0 0.0
  %1064 = vmatprep.subr.mxu0 0.0
  %1065 = vmatpush1.msra.mxu0 0.0
  %1066 = vmatprep.subr.mxu0 0.0
  %1067 = vmatpush1.msra.mxu0 0.0
  %1068 = vmatprep.subr.mxu0 0.0
  %1069 = vmatpush1.msra.mxu0 0.0
  %1070 = vmatprep.subr.mxu0 0.0
  %1071 = vmatpush1.msra.mxu0 0.0
  %1072 = vmatprep.subr.mxu0 0.0
  %1073 = vmatpush1.msra.mxu0 0.0
  %1074 = vmatprep.subr.mxu0 0.0
  %1075 = vmatpush1.msra.mxu0 0.0
  %1076 = vmatprep.subr.mxu0 0.0
  %1077 = vmatpush1.msra.mxu0 0.0
  %1078 = vmatprep.subr.mxu0 0.0
  %1079 = vmatpush1.msra.mxu0 0.0
  %1080 = vmatprep.subr.mxu0 0.0
  %1081 = vmatpush1.msra.mxu0 0.0
  %1082 = vmatprep.subr.mxu0 0.0
  %1083 = vmatpush1.msra.mxu0 0.0
  %1084 = vmatprep.subr.mxu0 0.0
  %1085 = vmatpush1.msra.mxu0 0.0
  %1086 = vmatprep.subr.mxu0 0.0
  %1087 = vmatpush1.msra.mxu0 0.0
  %1088 = vmatprep.subr.mxu0 0.0
  %1089 = vmatpush1.msra.mxu0 0.0
  %1090 = vmatprep.subr.mxu0 0.0
  %1091 = vmatpush1.msra.mxu0 0.0
  %1092 = vmatprep.subr.mxu0 0.0
  %1093 = vmatpush1.msra.mxu0 0.0
  %1094 = vmatprep.mubr.f32.mxu0 0.0
  %1095 = vmatmul.mubr.f32.gmra.mrb[0].mxu0 %v949
  %v1096 = vpop.f32.mrb[0].mxu0
  %v1097 = vadd.f32 0.0, %v1096
  %v1098 = vpop.f32.mrb[0].mxu0
  %v1099 = vadd.f32 0.0, %v1098
  %1100 = vdwg.mxu0
  %v1101 = vadd.f32 %v955, %v1026
  %v1102 = vadd.f32 %v956, %v1028
  %v1103 = vadd.f32 %v957, %v1097
  %v1104 = vadd.f32 %v958, %v1099
  %v1105 = vxor.u32 %v1101, 2147483648
  %v1106 = vmul.f32 %v1105, 1.442695
  %v1107 = vpow.pop %v1106
  %v1108 = vadd.f32 %v1107, 1.0
  %v1109 = vrcp.pop %v1108
  %v1110 = vmul.f32 1.0, %v1109
  %v1111 = vxor.u32 %v1102, 2147483648
  %v1112 = vmul.f32 %v1111, 1.442695
  %v1113 = vpow.pop %v1112
  %v1114 = vadd.f32 %v1113, 1.0
  %v1115 = vrcp.pop %v1114
  %v1116 = vmul.f32 1.0, %v1115
  %v1117 = vxor.u32 %v1103, 2147483648
  %v1118 = vmul.f32 %v1117, 1.442695
  %v1119 = vpow.pop %v1118
  %v1120 = vadd.f32 %v1119, 1.0
  %v1121 = vrcp.pop %v1120
  %v1122 = vmul.f32 1.0, %v1121
  %v1123 = vtanh.pop %v1104
  %v1124 = vmul.f32 %v1116, %v947
  %v1125 = vmul.f32 %v1110, %v1123
  %v1126 = vadd.f32 %v1124, %v1125
  %v1127 = vtanh.pop %v1126
  %v1128 = vmul.f32 %v1122, %v1127
  %s1129 = scalar_lea.vmem [#allocation3], 24
  %1130 = vst [vmem:[%s1129] sm:$0xff] %v1128
  %s1131 = smul.u32 4, 4
  %s1132 = smul.addr %s1131, 8
  %s1133 = scalar_lea.vmem [#allocation2], %s1132
  %v1134 = vld [vmem:[%s1133] sm:$0xff]
  %v1135 = vld [vmem:[%s1133 + $0x8] sm:$0xff]
  %v1136 = vld [vmem:[%s1133 + $0x10] sm:$0xff]
  %v1137 = vld [vmem:[%s1133 + $0x18] sm:$0xff]
  %1138 = vmatprep.subr.mxu0 %v351
  %1139 = vmatpush1.msra.mxu0 %v350
  %1140 = vmatprep.subr.mxu0 %v355
  %1141 = vmatpush1.msra.mxu0 %v354
  %1142 = vmatprep.subr.mxu0 %v359
  %1143 = vmatpush1.msra.mxu0 %v358
  %1144 = vmatprep.subr.mxu0 %v363
  %1145 = vmatpush1.msra.mxu0 %v362
  %1146 = vmatprep.subr.mxu0 %v367
  %1147 = vmatpush1.msra.mxu0 %v366
  %1148 = vmatprep.subr.mxu0 %v371
  %1149 = vmatpush1.msra.mxu0 %v370
  %1150 = vmatprep.subr.mxu0 %v375
  %1151 = vmatpush1.msra.mxu0 %v374
  %1152 = vmatprep.subr.mxu0 %v379
  %1153 = vmatpush1.msra.mxu0 %v378
  %1154 = vmatprep.subr.mxu0 %v383
  %1155 = vmatpush1.msra.mxu0 %v382
  %1156 = vmatprep.subr.mxu0 %v387
  %1157 = vmatpush1.msra.mxu0 %v386
  %1158 = vmatprep.subr.mxu0 %v391
  %1159 = vmatpush1.msra.mxu0 %v390
  %1160 = vmatprep.subr.mxu0 %v395
  %1161 = vmatpush1.msra.mxu0 %v394
  %1162 = vmatprep.subr.mxu0 %v399
  %1163 = vmatpush1.msra.mxu0 %v398
  %1164 = vmatprep.subr.mxu0 %v403
  %1165 = vmatpush1.msra.mxu0 %v402
  %1166 = vmatprep.subr.mxu0 %v407
  %1167 = vmatpush1.msra.mxu0 %v406
  %1168 = vmatprep.subr.mxu0 %v411
  %1169 = vmatpush1.msra.mxu0 %v410
  %1170 = vmatprep.subr.mxu0 0.0
  %1171 = vmatpush1.msra.mxu0 0.0
  %1172 = vmatprep.subr.mxu0 0.0
  %1173 = vmatpush1.msra.mxu0 0.0
  %1174 = vmatprep.subr.mxu0 0.0
  %1175 = vmatpush1.msra.mxu0 0.0
  %1176 = vmatprep.subr.mxu0 0.0
  %1177 = vmatpush1.msra.mxu0 0.0
  %1178 = vmatprep.subr.mxu0 0.0
  %1179 = vmatpush1.msra.mxu0 0.0
  %1180 = vmatprep.subr.mxu0 0.0
  %1181 = vmatpush1.msra.mxu0 0.0
  %1182 = vmatprep.subr.mxu0 0.0
  %1183 = vmatpush1.msra.mxu0 0.0
  %1184 = vmatprep.subr.mxu0 0.0
  %1185 = vmatpush1.msra.mxu0 0.0
  %1186 = vmatprep.subr.mxu0 0.0
  %1187 = vmatpush1.msra.mxu0 0.0
  %1188 = vmatprep.subr.mxu0 0.0
  %1189 = vmatpush1.msra.mxu0 0.0
  %1190 = vmatprep.subr.mxu0 0.0
  %1191 = vmatpush1.msra.mxu0 0.0
  %1192 = vmatprep.subr.mxu0 0.0
  %1193 = vmatpush1.msra.mxu0 0.0
  %1194 = vmatprep.subr.mxu0 0.0
  %1195 = vmatpush1.msra.mxu0 0.0
  %1196 = vmatprep.subr.mxu0 0.0
  %1197 = vmatpush1.msra.mxu0 0.0
  %1198 = vmatprep.subr.mxu0 0.0
  %1199 = vmatpush1.msra.mxu0 0.0
  %1200 = vmatprep.subr.mxu0 0.0
  %1201 = vmatpush1.msra.mxu0 0.0
  %1202 = vmatprep.mubr.f32.mxu0 0.0
  %1203 = vmatmul.mubr.f32.gmra.mrb[0].mxu0 %v1128
  %v1204 = vpop.f32.mrb[0].mxu0
  %v1205 = vadd.f32 0.0, %v1204
  %v1206 = vpop.f32.mrb[0].mxu0
  %v1207 = vadd.f32 0.0, %v1206
  %1208 = vdwg.mxu0
  %1209 = vmatprep.subr.mxu0 %v353
  %1210 = vmatpush1.msra.mxu0 %v352
  %1211 = vmatprep.subr.mxu0 %v357
  %1212 = vmatpush1.msra.mxu0 %v356
  %1213 = vmatprep.subr.mxu0 %v361
  %1214 = vmatpush1.msra.mxu0 %v360
  %1215 = vmatprep.subr.mxu0 %v365
  %1216 = vmatpush1.msra.mxu0 %v364
  %1217 = vmatprep.subr.mxu0 %v369
  %1218 = vmatpush1.msra.mxu0 %v368
  %1219 = vmatprep.subr.mxu0 %v373
  %1220 = vmatpush1.msra.mxu0 %v372
  %1221 = vmatprep.subr.mxu0 %v377
  %1222 = vmatpush1.msra.mxu0 %v376
  %1223 = vmatprep.subr.mxu0 %v381
  %1224 = vmatpush1.msra.mxu0 %v380
  %1225 = vmatprep.subr.mxu0 %v385
  %1226 = vmatpush1.msra.mxu0 %v384
  %1227 = vmatprep.subr.mxu0 %v389
  %1228 = vmatpush1.msra.mxu0 %v388
  %1229 = vmatprep.subr.mxu0 %v393
  %1230 = vmatpush1.msra.mxu0 %v392
  %1231 = vmatprep.subr.mxu0 %v397
  %1232 = vmatpush1.msra.mxu0 %v396
  %1233 = vmatprep.subr.mxu0 %v401
  %1234 = vmatpush1.msra.mxu0 %v400
  %1235 = vmatprep.subr.mxu0 %v405
  %1236 = vmatpush1.msra.mxu0 %v404
  %1237 = vmatprep.subr.mxu0 %v409
  %1238 = vmatpush1.msra.mxu0 %v408
  %1239 = vmatprep.subr.mxu0 %v413
  %1240 = vmatpush1.msra.mxu0 %v412
  %1241 = vmatprep.subr.mxu0 0.0
  %1242 = vmatpush1.msra.mxu0 0.0
  %1243 = vmatprep.subr.mxu0 0.0
  %1244 = vmatpush1.msra.mxu0 0.0
  %1245 = vmatprep.subr.mxu0 0.0
  %1246 = vmatpush1.msra.mxu0 0.0
  %1247 = vmatprep.subr.mxu0 0.0
  %1248 = vmatpush1.msra.mxu0 0.0
  %1249 = vmatprep.subr.mxu0 0.0
  %1250 = vmatpush1.msra.mxu0 0.0
  %1251 = vmatprep.subr.mxu0 0.0
  %1252 = vmatpush1.msra.mxu0 0.0
  %1253 = vmatprep.subr.mxu0 0.0
  %1254 = vmatpush1.msra.mxu0 0.0
  %1255 = vmatprep.subr.mxu0 0.0
  %1256 = vmatpush1.msra.mxu0 0.0
  %1257 = vmatprep.subr.mxu0 0.0
  %1258 = vmatpush1.msra.mxu0 0.0
  %1259 = vmatprep.subr.mxu0 0.0
  %1260 = vmatpush1.msra.mxu0 0.0
  %1261 = vmatprep.subr.mxu0 0.0
  %1262 = vmatpush1.msra.mxu0 0.0
  %1263 = vmatprep.subr.mxu0 0.0
  %1264 = vmatpush1.msra.mxu0 0.0
  %1265 = vmatprep.subr.mxu0 0.0
  %1266 = vmatpush1.msra.mxu0 0.0
  %1267 = vmatprep.subr.mxu0 0.0
  %1268 = vmatpush1.msra.mxu0 0.0
  %1269 = vmatprep.subr.mxu0 0.0
  %1270 = vmatpush1.msra.mxu0 0.0
  %1271 = vmatprep.subr.mxu0 0.0
  %1272 = vmatpush1.msra.mxu0 0.0
  %1273 = vmatprep.mubr.f32.mxu0 0.0
  %1274 = vmatmul.mubr.f32.gmra.mrb[0].mxu0 %v1128
  %v1275 = vpop.f32.mrb[0].mxu0
  %v1276 = vadd.f32 0.0, %v1275
  %v1277 = vpop.f32.mrb[0].mxu0
  %v1278 = vadd.f32 0.0, %v1277
  %1279 = vdwg.mxu0
  %v1280 = vadd.f32 %v1134, %v1205
  %v1281 = vadd.f32 %v1135, %v1207
  %v1282 = vadd.f32 %v1136, %v1276
  %v1283 = vadd.f32 %v1137, %v1278
  %v1284 = vxor.u32 %v1280, 2147483648
  %v1285 = vmul.f32 %v1284, 1.442695
  %v1286 = vpow.pop %v1285
  %v1287 = vadd.f32 %v1286, 1.0
  %v1288 = vrcp.pop %v1287
  %v1289 = vmul.f32 1.0, %v1288
  %v1290 = vxor.u32 %v1281, 2147483648
  %v1291 = vmul.f32 %v1290, 1.442695
  %v1292 = vpow.pop %v1291
  %v1293 = vadd.f32 %v1292, 1.0
  %v1294 = vrcp.pop %v1293
  %v1295 = vmul.f32 1.0, %v1294
  %v1296 = vxor.u32 %v1282, 2147483648
  %v1297 = vmul.f32 %v1296, 1.442695
  %v1298 = vpow.pop %v1297
  %v1299 = vadd.f32 %v1298, 1.0
  %v1300 = vrcp.pop %v1299
  %v1301 = vmul.f32 1.0, %v1300
  %v1302 = vtanh.pop %v1283
  %v1303 = vmul.f32 %v1295, %v1126
  %v1304 = vmul.f32 %v1289, %v1302
  %v1305 = vadd.f32 %v1303, %v1304
  %v1306 = vtanh.pop %v1305
  %v1307 = vmul.f32 %v1301, %v1306
  %s1308 = scalar_lea.vmem [#allocation3], 32
  %1309 = vst [vmem:[%s1308] sm:$0xff] %v1307
  %s1310 = smul.u32 5, 4
  %s1311 = smul.addr %s1310, 8
  %s1312 = scalar_lea.vmem [#allocation2], %s1311
  %v1313 = vld [vmem:[%s1312] sm:$0xff]
  %v1314 = vld [vmem:[%s1312 + $0x8] sm:$0xff]
  %v1315 = vld [vmem:[%s1312 + $0x10] sm:$0xff]
  %v1316 = vld [vmem:[%s1312 + $0x18] sm:$0xff]
  %1317 = vmatprep.subr.mxu0 %v351
  %1318 = vmatpush1.msra.mxu0 %v350
  %1319 = vmatprep.subr.mxu0 %v355
  %1320 = vmatpush1.msra.mxu0 %v354
  %1321 = vmatprep.subr.mxu0 %v359
  %1322 = vmatpush1.msra.mxu0 %v358
  %1323 = vmatprep.subr.mxu0 %v363
  %1324 = vmatpush1.msra.mxu0 %v362
  %1325 = vmatprep.subr.mxu0 %v367
  %1326 = vmatpush1.msra.mxu0 %v366
  %1327 = vmatprep.subr.mxu0 %v371
  %1328 = vmatpush1.msra.mxu0 %v370
  %1329 = vmatprep.subr.mxu0 %v375
  %1330 = vmatpush1.msra.mxu0 %v374
  %1331 = vmatprep.subr.mxu0 %v379
  %1332 = vmatpush1.msra.mxu0 %v378
  %1333 = vmatprep.subr.mxu0 %v383
  %1334 = vmatpush1.msra.mxu0 %v382
  %1335 = vmatprep.subr.mxu0 %v387
  %1336 = vmatpush1.msra.mxu0 %v386
  %1337 = vmatprep.subr.mxu0 %v391
  %1338 = vmatpush1.msra.mxu0 %v390
  %1339 = vmatprep.subr.mxu0 %v395
  %1340 = vmatpush1.msra.mxu0 %v394
  %1341 = vmatprep.subr.mxu0 %v399
  %1342 = vmatpush1.msra.mxu0 %v398
  %1343 = vmatprep.subr.mxu0 %v403
  %1344 = vmatpush1.msra.mxu0 %v402
  %1345 = vmatprep.subr.mxu0 %v407
  %1346 = vmatpush1.msra.mxu0 %v406
  %1347 = vmatprep.subr.mxu0 %v411
  %1348 = vmatpush1.msra.mxu0 %v410
  %1349 = vmatprep.subr.mxu0 0.0
  %1350 = vmatpush1.msra.mxu0 0.0
  %1351 = vmatprep.subr.mxu0 0.0
  %1352 = vmatpush1.msra.mxu0 0.0
  %1353 = vmatprep.subr.mxu0 0.0
  %1354 = vmatpush1.msra.mxu0 0.0
  %1355 = vmatprep.subr.mxu0 0.0
  %1356 = vmatpush1.msra.mxu0 0.0
  %1357 = vmatprep.subr.mxu0 0.0
  %1358 = vmatpush1.msra.mxu0 0.0
  %1359 = vmatprep.subr.mxu0 0.0
  %1360 = vmatpush1.msra.mxu0 0.0
  %1361 = vmatprep.subr.mxu0 0.0
  %1362 = vmatpush1.msra.mxu0 0.0
  %1363 = vmatprep.subr.mxu0 0.0
  %1364 = vmatpush1.msra.mxu0 0.0
  %1365 = vmatprep.subr.mxu0 0.0
  %1366 = vmatpush1.msra.mxu0 0.0
  %1367 = vmatprep.subr.mxu0 0.0
  %1368 = vmatpush1.msra.mxu0 0.0
  %1369 = vmatprep.subr.mxu0 0.0
  %1370 = vmatpush1.msra.mxu0 0.0
  %1371 = vmatprep.subr.mxu0 0.0
  %1372 = vmatpush1.msra.mxu0 0.0
  %1373 = vmatprep.subr.mxu0 0.0
  %1374 = vmatpush1.msra.mxu0 0.0
  %1375 = vmatprep.subr.mxu0 0.0
  %1376 = vmatpush1.msra.mxu0 0.0
  %1377 = vmatprep.subr.mxu0 0.0
  %1378 = vmatpush1.msra.mxu0 0.0
  %1379 = vmatprep.subr.mxu0 0.0
  %1380 = vmatpush1.msra.mxu0 0.0
  %1381 = vmatprep.mubr.f32.mxu0 0.0
  %1382 = vmatmul.mubr.f32.gmra.mrb[0].mxu0 %v1307
  %v1383 = vpop.f32.mrb[0].mxu0
  %v1384 = vadd.f32 0.0, %v1383
  %v1385 = vpop.f32.mrb[0].mxu0
  %v1386 = vadd.f32 0.0, %v1385
  %1387 = vdwg.mxu0
  %1388 = vmatprep.subr.mxu0 %v353
  %1389 = vmatpush1.msra.mxu0 %v352
  %1390 = vmatprep.subr.mxu0 %v357
  %1391 = vmatpush1.msra.mxu0 %v356
  %1392 = vmatprep.subr.mxu0 %v361
  %1393 = vmatpush1.msra.mxu0 %v360
  %1394 = vmatprep.subr.mxu0 %v365
  %1395 = vmatpush1.msra.mxu0 %v364
  %1396 = vmatprep.subr.mxu0 %v369
  %1397 = vmatpush1.msra.mxu0 %v368
  %1398 = vmatprep.subr.mxu0 %v373
  %1399 = vmatpush1.msra.mxu0 %v372
  %1400 = vmatprep.subr.mxu0 %v377
  %1401 = vmatpush1.msra.mxu0 %v376
  %1402 = vmatprep.subr.mxu0 %v381
  %1403 = vmatpush1.msra.mxu0 %v380
  %1404 = vmatprep.subr.mxu0 %v385
  %1405 = vmatpush1.msra.mxu0 %v384
  %1406 = vmatprep.subr.mxu0 %v389
  %1407 = vmatpush1.msra.mxu0 %v388
  %1408 = vmatprep.subr.mxu0 %v393
  %1409 = vmatpush1.msra.mxu0 %v392
  %1410 = vmatprep.subr.mxu0 %v397
  %1411 = vmatpush1.msra.mxu0 %v396
  %1412 = vmatprep.subr.mxu0 %v401
  %1413 = vmatpush1.msra.mxu0 %v400
  %1414 = vmatprep.subr.mxu0 %v405
  %1415 = vmatpush1.msra.mxu0 %v404
  %1416 = vmatprep.subr.mxu0 %v409
  %1417 = vmatpush1.msra.mxu0 %v408
  %1418 = vmatprep.subr.mxu0 %v413
  %1419 = vmatpush1.msra.mxu0 %v412
  %1420 = vmatprep.subr.mxu0 0.0
  %1421 = vmatpush1.msra.mxu0 0.0
  %1422 = vmatprep.subr.mxu0 0.0
  %1423 = vmatpush1.msra.mxu0 0.0
  %1424 = vmatprep.subr.mxu0 0.0
  %1425 = vmatpush1.msra.mxu0 0.0
  %1426 = vmatprep.subr.mxu0 0.0
  %1427 = vmatpush1.msra.mxu0 0.0
  %1428 = vmatprep.subr.mxu0 0.0
  %1429 = vmatpush1.msra.mxu0 0.0
  %1430 = vmatprep.subr.mxu0 0.0
  %1431 = vmatpush1.msra.mxu0 0.0
  %1432 = vmatprep.subr.mxu0 0.0
  %1433 = vmatpush1.msra.mxu0 0.0
  %1434 = vmatprep.subr.mxu0 0.0
  %1435 = vmatpush1.msra.mxu0 0.0
  %1436 = vmatprep.subr.mxu0 0.0
  %1437 = vmatpush1.msra.mxu0 0.0
  %1438 = vmatprep.subr.mxu0 0.0
  %1439 = vmatpush1.msra.mxu0 0.0
  %1440 = vmatprep.subr.mxu0 0.0
  %1441 = vmatpush1.msra.mxu0 0.0
  %1442 = vmatprep.subr.mxu0 0.0
  %1443 = vmatpush1.msra.mxu0 0.0
  %1444 = vmatprep.subr.mxu0 0.0
  %1445 = vmatpush1.msra.mxu0 0.0
  %1446 = vmatprep.subr.mxu0 0.0
  %1447 = vmatpush1.msra.mxu0 0.0
  %1448 = vmatprep.subr.mxu0 0.0
  %1449 = vmatpush1.msra.mxu0 0.0
  %1450 = vmatprep.subr.mxu0 0.0
  %1451 = vmatpush1.msra.mxu0 0.0
  %1452 = vmatprep.mubr.f32.mxu0 0.0
  %1453 = vmatmul.mubr.f32.gmra.mrb[0].mxu0 %v1307
  %v1454 = vpop.f32.mrb[0].mxu0
  %v1455 = vadd.f32 0.0, %v1454
  %v1456 = vpop.f32.mrb[0].mxu0
  %v1457 = vadd.f32 0.0, %v1456
  %1458 = vdwg.mxu0
  %v1459 = vadd.f32 %v1313, %v1384
  %v1460 = vadd.f32 %v1314, %v1386
  %v1461 = vadd.f32 %v1315, %v1455
  %v1462 = vadd.f32 %v1316, %v1457
  %v1463 = vxor.u32 %v1459, 2147483648
  %v1464 = vmul.f32 %v1463, 1.442695
  %v1465 = vpow.pop %v1464
  %v1466 = vadd.f32 %v1465, 1.0
  %v1467 = vrcp.pop %v1466
  %v1468 = vmul.f32 1.0, %v1467
  %v1469 = vxor.u32 %v1460, 2147483648
  %v1470 = vmul.f32 %v1469, 1.442695
  %v1471 = vpow.pop %v1470
  %v1472 = vadd.f32 %v1471, 1.0
  %v1473 = vrcp.pop %v1472
  %v1474 = vmul.f32 1.0, %v1473
  %v1475 = vxor.u32 %v1461, 2147483648
  %v1476 = vmul.f32 %v1475, 1.442695
  %v1477 = vpow.pop %v1476
  %v1478 = vadd.f32 %v1477, 1.0
  %v1479 = vrcp.pop %v1478
  %v1480 = vmul.f32 1.0, %v1479
  %v1481 = vtanh.pop %v1462
  %v1482 = vmul.f32 %v1474, %v1305
  %v1483 = vmul.f32 %v1468, %v1481
  %v1484 = vadd.f32 %v1482, %v1483
  %v1485 = vtanh.pop %v1484
  %v1486 = vmul.f32 %v1480, %v1485
  %s1487 = scalar_lea.vmem [#allocation3], 40
  %1488 = vst [vmem:[%s1487] sm:$0xff] %v1486
  %s1489 = smul.u32 6, 4
  %s1490 = smul.addr %s1489, 8
  %s1491 = scalar_lea.vmem [#allocation2], %s1490
  %v1492 = vld [vmem:[%s1491] sm:$0xff]
  %v1493 = vld [vmem:[%s1491 + $0x8] sm:$0xff]
  %v1494 = vld [vmem:[%s1491 + $0x10] sm:$0xff]
  %v1495 = vld [vmem:[%s1491 + $0x18] sm:$0xff]
  %1496 = vmatprep.subr.mxu0 %v351
  %1497 = vmatpush1.msra.mxu0 %v350
  %1498 = vmatprep.subr.mxu0 %v355
  %1499 = vmatpush1.msra.mxu0 %v354
  %1500 = vmatprep.subr.mxu0 %v359
  %1501 = vmatpush1.msra.mxu0 %v358
  %1502 = vmatprep.subr.mxu0 %v363
  %1503 = vmatpush1.msra.mxu0 %v362
  %1504 = vmatprep.subr.mxu0 %v367
  %1505 = vmatpush1.msra.mxu0 %v366
  %1506 = vmatprep.subr.mxu0 %v371
  %1507 = vmatpush1.msra.mxu0 %v370
  %1508 = vmatprep.subr.mxu0 %v375
  %1509 = vmatpush1.msra.mxu0 %v374
  %1510 = vmatprep.subr.mxu0 %v379
  %1511 = vmatpush1.msra.mxu0 %v378
  %1512 = vmatprep.subr.mxu0 %v383
  %1513 = vmatpush1.msra.mxu0 %v382
  %1514 = vmatprep.subr.mxu0 %v387
  %1515 = vmatpush1.msra.mxu0 %v386
  %1516 = vmatprep.subr.mxu0 %v391
  %1517 = vmatpush1.msra.mxu0 %v390
  %1518 = vmatprep.subr.mxu0 %v395
  %1519 = vmatpush1.msra.mxu0 %v394
  %1520 = vmatprep.subr.mxu0 %v399
  %1521 = vmatpush1.msra.mxu0 %v398
  %1522 = vmatprep.subr.mxu0 %v403
  %1523 = vmatpush1.msra.mxu0 %v402
  %1524 = vmatprep.subr.mxu0 %v407
  %1525 = vmatpush1.msra.mxu0 %v406
  %1526 = vmatprep.subr.mxu0 %v411
  %1527 = vmatpush1.msra.mxu0 %v410
  %1528 = vmatprep.subr.mxu0 0.0
  %1529 = vmatpush1.msra.mxu0 0.0
  %1530 = vmatprep.subr.mxu0 0.0
  %1531 = vmatpush1.msra.mxu0 0.0
  %1532 = vmatprep.subr.mxu0 0.0
  %1533 = vmatpush1.msra.mxu0 0.0
  %1534 = vmatprep.subr.mxu0 0.0
  %1535 = vmatpush1.msra.mxu0 0.0
  %1536 = vmatprep.subr.mxu0 0.0
  %1537 = vmatpush1.msra.mxu0 0.0
  %1538 = vmatprep.subr.mxu0 0.0
  %1539 = vmatpush1.msra.mxu0 0.0
  %1540 = vmatprep.subr.mxu0 0.0
  %1541 = vmatpush1.msra.mxu0 0.0
  %1542 = vmatprep.subr.mxu0 0.0
  %1543 = vmatpush1.msra.mxu0 0.0
  %1544 = vmatprep.subr.mxu0 0.0
  %1545 = vmatpush1.msra.mxu0 0.0
  %1546 = vmatprep.subr.mxu0 0.0
  %1547 = vmatpush1.msra.mxu0 0.0
  %1548 = vmatprep.subr.mxu0 0.0
  %1549 = vmatpush1.msra.mxu0 0.0
  %1550 = vmatprep.subr.mxu0 0.0
  %1551 = vmatpush1.msra.mxu0 0.0
  %1552 = vmatprep.subr.mxu0 0.0
  %1553 = vmatpush1.msra.mxu0 0.0
  %1554 = vmatprep.subr.mxu0 0.0
  %1555 = vmatpush1.msra.mxu0 0.0
  %1556 = vmatprep.subr.mxu0 0.0
  %1557 = vmatpush1.msra.mxu0 0.0
  %1558 = vmatprep.subr.mxu0 0.0
  %1559 = vmatpush1.msra.mxu0 0.0
  %1560 = vmatprep.mubr.f32.mxu0 0.0
  %1561 = vmatmul.mubr.f32.gmra.mrb[0].mxu0 %v1486
  %v1562 = vpop.f32.mrb[0].mxu0
  %v1563 = vadd.f32 0.0, %v1562
  %v1564 = vpop.f32.mrb[0].mxu0
  %v1565 = vadd.f32 0.0, %v1564
  %1566 = vdwg.mxu0
  %1567 = vmatprep.subr.mxu0 %v353
  %1568 = vmatpush1.msra.mxu0 %v352
  %1569 = vmatprep.subr.mxu0 %v357
  %1570 = vmatpush1.msra.mxu0 %v356
  %1571 = vmatprep.subr.mxu0 %v361
  %1572 = vmatpush1.msra.mxu0 %v360
  %1573 = vmatprep.subr.mxu0 %v365
  %1574 = vmatpush1.msra.mxu0 %v364
  %1575 = vmatprep.subr.mxu0 %v369
  %1576 = vmatpush1.msra.mxu0 %v368
  %1577 = vmatprep.subr.mxu0 %v373
  %1578 = vmatpush1.msra.mxu0 %v372
  %1579 = vmatprep.subr.mxu0 %v377
  %1580 = vmatpush1.msra.mxu0 %v376
  %1581 = vmatprep.subr.mxu0 %v381
  %1582 = vmatpush1.msra.mxu0 %v380
  %1583 = vmatprep.subr.mxu0 %v385
  %1584 = vmatpush1.msra.mxu0 %v384
  %1585 = vmatprep.subr.mxu0 %v389
  %1586 = vmatpush1.msra.mxu0 %v388
  %1587 = vmatprep.subr.mxu0 %v393
  %1588 = vmatpush1.msra.mxu0 %v392
  %1589 = vmatprep.subr.mxu0 %v397
  %1590 = vmatpush1.msra.mxu0 %v396
  %1591 = vmatprep.subr.mxu0 %v401
  %1592 = vmatpush1.msra.mxu0 %v400
  %1593 = vmatprep.subr.mxu0 %v405
  %1594 = vmatpush1.msra.mxu0 %v404
  %1595 = vmatprep.subr.mxu0 %v409
  %1596 = vmatpush1.msra.mxu0 %v408
  %1597 = vmatprep.subr.mxu0 %v413
  %1598 = vmatpush1.msra.mxu0 %v412
  %1599 = vmatprep.subr.mxu0 0.0
  %1600 = vmatpush1.msra.mxu0 0.0
  %1601 = vmatprep.subr.mxu0 0.0
  %1602 = vmatpush1.msra.mxu0 0.0
  %1603 = vmatprep.subr.mxu0 0.0
  %1604 = vmatpush1.msra.mxu0 0.0
  %1605 = vmatprep.subr.mxu0 0.0
  %1606 = vmatpush1.msra.mxu0 0.0
  %1607 = vmatprep.subr.mxu0 0.0
  %1608 = vmatpush1.msra.mxu0 0.0
  %1609 = vmatprep.subr.mxu0 0.0
  %1610 = vmatpush1.msra.mxu0 0.0
  %1611 = vmatprep.subr.mxu0 0.0
  %1612 = vmatpush1.msra.mxu0 0.0
  %1613 = vmatprep.subr.mxu0 0.0
  %1614 = vmatpush1.msra.mxu0 0.0
  %1615 = vmatprep.subr.mxu0 0.0
  %1616 = vmatpush1.msra.mxu0 0.0
  %1617 = vmatprep.subr.mxu0 0.0
  %1618 = vmatpush1.msra.mxu0 0.0
  %1619 = vmatprep.subr.mxu0 0.0
  %1620 = vmatpush1.msra.mxu0 0.0
  %1621 = vmatprep.subr.mxu0 0.0
  %1622 = vmatpush1.msra.mxu0 0.0
  %1623 = vmatprep.subr.mxu0 0.0
  %1624 = vmatpush1.msra.mxu0 0.0
  %1625 = vmatprep.subr.mxu0 0.0
  %1626 = vmatpush1.msra.mxu0 0.0
  %1627 = vmatprep.subr.mxu0 0.0
  %1628 = vmatpush1.msra.mxu0 0.0
  %1629 = vmatprep.subr.mxu0 0.0
  %1630 = vmatpush1.msra.mxu0 0.0
  %1631 = vmatprep.mubr.f32.mxu0 0.0
  %1632 = vmatmul.mubr.f32.gmra.mrb[0].mxu0 %v1486
  %v1633 = vpop.f32.mrb[0].mxu0
  %v1634 = vadd.f32 0.0, %v1633
  %v1635 = vpop.f32.mrb[0].mxu0
  %v1636 = vadd.f32 0.0, %v1635
  %1637 = vdwg.mxu0
  %v1638 = vadd.f32 %v1492, %v1563
  %v1639 = vadd.f32 %v1493, %v1565
  %v1640 = vadd.f32 %v1494, %v1634
  %v1641 = vadd.f32 %v1495, %v1636
  %v1642 = vxor.u32 %v1638, 2147483648
  %v1643 = vmul.f32 %v1642, 1.442695
  %v1644 = vpow.pop %v1643
  %v1645 = vadd.f32 %v1644, 1.0
  %v1646 = vrcp.pop %v1645
  %v1647 = vmul.f32 1.0, %v1646
  %v1648 = vxor.u32 %v1639, 2147483648
  %v1649 = vmul.f32 %v1648, 1.442695
  %v1650 = vpow.pop %v1649
  %v1651 = vadd.f32 %v1650, 1.0
  %v1652 = vrcp.pop %v1651
  %v1653 = vmul.f32 1.0, %v1652
  %v1654 = vxor.u32 %v1640, 2147483648
  %v1655 = vmul.f32 %v1654, 1.442695
  %v1656 = vpow.pop %v1655
  %v1657 = vadd.f32 %v1656, 1.0
  %v1658 = vrcp.pop %v1657
  %v1659 = vmul.f32 1.0, %v1658
  %v1660 = vtanh.pop %v1641
  %v1661 = vmul.f32 %v1653, %v1484
  %v1662 = vmul.f32 %v1647, %v1660
  %v1663 = vadd.f32 %v1661, %v1662
  %v1664 = vtanh.pop %v1663
  %v1665 = vmul.f32 %v1659, %v1664
  %s1666 = scalar_lea.vmem [#allocation3], 48
  %1667 = vst [vmem:[%s1666] sm:$0xff] %v1665
  %s1668 = smul.u32 7, 4
  %s1669 = smul.addr %s1668, 8
  %s1670 = scalar_lea.vmem [#allocation2], %s1669
  %v1671 = vld [vmem:[%s1670] sm:$0xff]
  %v1672 = vld [vmem:[%s1670 + $0x8] sm:$0xff]
  %v1673 = vld [vmem:[%s1670 + $0x10] sm:$0xff]
  %v1674 = vld [vmem:[%s1670 + $0x18] sm:$0xff]
  %1675 = vmatprep.subr.mxu0 %v351
  %1676 = vmatpush1.msra.mxu0 %v350
  %1677 = vmatprep.subr.mxu0 %v355
  %1678 = vmatpush1.msra.mxu0 %v354
  %1679 = vmatprep.subr.mxu0 %v359
  %1680 = vmatpush1.msra.mxu0 %v358
  %1681 = vmatprep.subr.mxu0 %v363
  %1682 = vmatpush1.msra.mxu0 %v362
  %1683 = vmatprep.subr.mxu0 %v367
  %1684 = vmatpush1.msra.mxu0 %v366
  %1685 = vmatprep.subr.mxu0 %v371
  %1686 = vmatpush1.msra.mxu0 %v370
  %1687 = vmatprep.subr.mxu0 %v375
  %1688 = vmatpush1.msra.mxu0 %v374
  %1689 = vmatprep.subr.mxu0 %v379
  %1690 = vmatpush1.msra.mxu0 %v378
  %1691 = vmatprep.subr.mxu0 %v383
  %1692 = vmatpush1.msra.mxu0 %v382
  %1693 = vmatprep.subr.mxu0 %v387
  %1694 = vmatpush1.msra.mxu0 %v386
  %1695 = vmatprep.subr.mxu0 %v391
  %1696 = vmatpush1.msra.mxu0 %v390
  %1697 = vmatprep.subr.mxu0 %v395
  %1698 = vmatpush1.msra.mxu0 %v394
  %1699 = vmatprep.subr.mxu0 %v399
  %1700 = vmatpush1.msra.mxu0 %v398
  %1701 = vmatprep.subr.mxu0 %v403
  %1702 = vmatpush1.msra.mxu0 %v402
  %1703 = vmatprep.subr.mxu0 %v407
  %1704 = vmatpush1.msra.mxu0 %v406
  %1705 = vmatprep.subr.mxu0 %v411
  %1706 = vmatpush1.msra.mxu0 %v410
  %1707 = vmatprep.subr.mxu0 0.0
  %1708 = vmatpush1.msra.mxu0 0.0
  %1709 = vmatprep.subr.mxu0 0.0
  %1710 = vmatpush1.msra.mxu0 0.0
  %1711 = vmatprep.subr.mxu0 0.0
  %1712 = vmatpush1.msra.mxu0 0.0
  %1713 = vmatprep.subr.mxu0 0.0
  %1714 = vmatpush1.msra.mxu0 0.0
  %1715 = vmatprep.subr.mxu0 0.0
  %1716 = vmatpush1.msra.mxu0 0.0
  %1717 = vmatprep.subr.mxu0 0.0
  %1718 = vmatpush1.msra.mxu0 0.0
  %1719 = vmatprep.subr.mxu0 0.0
  %1720 = vmatpush1.msra.mxu0 0.0
  %1721 = vmatprep.subr.mxu0 0.0
  %1722 = vmatpush1.msra.mxu0 0.0
  %1723 = vmatprep.subr.mxu0 0.0
  %1724 = vmatpush1.msra.mxu0 0.0
  %1725 = vmatprep.subr.mxu0 0.0
  %1726 = vmatpush1.msra.mxu0 0.0
  %1727 = vmatprep.subr.mxu0 0.0
  %1728 = vmatpush1.msra.mxu0 0.0
  %1729 = vmatprep.subr.mxu0 0.0
  %1730 = vmatpush1.msra.mxu0 0.0
  %1731 = vmatprep.subr.mxu0 0.0
  %1732 = vmatpush1.msra.mxu0 0.0
  %1733 = vmatprep.subr.mxu0 0.0
  %1734 = vmatpush1.msra.mxu0 0.0
  %1735 = vmatprep.subr.mxu0 0.0
  %1736 = vmatpush1.msra.mxu0 0.0
  %1737 = vmatprep.subr.mxu0 0.0
  %1738 = vmatpush1.msra.mxu0 0.0
  %1739 = vmatprep.mubr.f32.mxu0 0.0
  %1740 = vmatmul.mubr.f32.gmra.mrb[0].mxu0 %v1665
  %v1741 = vpop.f32.mrb[0].mxu0
  %v1742 = vadd.f32 0.0, %v1741
  %v1743 = vpop.f32.mrb[0].mxu0
  %v1744 = vadd.f32 0.0, %v1743
  %1745 = vdwg.mxu0
  %1746 = vmatprep.subr.mxu0 %v353
  %1747 = vmatpush1.msra.mxu0 %v352
  %1748 = vmatprep.subr.mxu0 %v357
  %1749 = vmatpush1.msra.mxu0 %v356
  %1750 = vmatprep.subr.mxu0 %v361
  %1751 = vmatpush1.msra.mxu0 %v360
  %1752 = vmatprep.subr.mxu0 %v365
  %1753 = vmatpush1.msra.mxu0 %v364
  %1754 = vmatprep.subr.mxu0 %v369
  %1755 = vmatpush1.msra.mxu0 %v368
  %1756 = vmatprep.subr.mxu0 %v373
  %1757 = vmatpush1.msra.mxu0 %v372
  %1758 = vmatprep.subr.mxu0 %v377
  %1759 = vmatpush1.msra.mxu0 %v376
  %1760 = vmatprep.subr.mxu0 %v381
  %1761 = vmatpush1.msra.mxu0 %v380
  %1762 = vmatprep.subr.mxu0 %v385
  %1763 = vmatpush1.msra.mxu0 %v384
  %1764 = vmatprep.subr.mxu0 %v389
  %1765 = vmatpush1.msra.mxu0 %v388
  %1766 = vmatprep.subr.mxu0 %v393
  %1767 = vmatpush1.msra.mxu0 %v392
  %1768 = vmatprep.subr.mxu0 %v397
  %1769 = vmatpush1.msra.mxu0 %v396
  %1770 = vmatprep.subr.mxu0 %v401
  %1771 = vmatpush1.msra.mxu0 %v400
  %1772 = vmatprep.subr.mxu0 %v405
  %1773 = vmatpush1.msra.mxu0 %v404
  %1774 = vmatprep.subr.mxu0 %v409
  %1775 = vmatpush1.msra.mxu0 %v408
  %1776 = vmatprep.subr.mxu0 %v413
  %1777 = vmatpush1.msra.mxu0 %v412
  %1778 = vmatprep.subr.mxu0 0.0
  %1779 = vmatpush1.msra.mxu0 0.0
  %1780 = vmatprep.subr.mxu0 0.0
  %1781 = vmatpush1.msra.mxu0 0.0
  %1782 = vmatprep.subr.mxu0 0.0
  %1783 = vmatpush1.msra.mxu0 0.0
  %1784 = vmatprep.subr.mxu0 0.0
  %1785 = vmatpush1.msra.mxu0 0.0
  %1786 = vmatprep.subr.mxu0 0.0
  %1787 = vmatpush1.msra.mxu0 0.0
  %1788 = vmatprep.subr.mxu0 0.0
  %1789 = vmatpush1.msra.mxu0 0.0
  %1790 = vmatprep.subr.mxu0 0.0
  %1791 = vmatpush1.msra.mxu0 0.0
  %1792 = vmatprep.subr.mxu0 0.0
  %1793 = vmatpush1.msra.mxu0 0.0
  %1794 = vmatprep.subr.mxu0 0.0
  %1795 = vmatpush1.msra.mxu0 0.0
  %1796 = vmatprep.subr.mxu0 0.0
  %1797 = vmatpush1.msra.mxu0 0.0
  %1798 = vmatprep.subr.mxu0 0.0
  %1799 = vmatpush1.msra.mxu0 0.0
  %1800 = vmatprep.subr.mxu0 0.0
  %1801 = vmatpush1.msra.mxu0 0.0
  %1802 = vmatprep.subr.mxu0 0.0
  %1803 = vmatpush1.msra.mxu0 0.0
  %1804 = vmatprep.subr.mxu0 0.0
  %1805 = vmatpush1.msra.mxu0 0.0
  %1806 = vmatprep.subr.mxu0 0.0
  %1807 = vmatpush1.msra.mxu0 0.0
  %1808 = vmatprep.subr.mxu0 0.0
  %1809 = vmatpush1.msra.mxu0 0.0
  %1810 = vmatprep.mubr.f32.mxu0 0.0
  %1811 = vmatmul.mubr.f32.gmra.mrb[0].mxu0 %v1665
  %v1812 = vpop.f32.mrb[0].mxu0
  %v1813 = vadd.f32 0.0, %v1812
  %v1814 = vpop.f32.mrb[0].mxu0
  %v1815 = vadd.f32 0.0, %v1814
  %1816 = vdwg.mxu0
  %v1817 = vadd.f32 %v1671, %v1742
  %v1818 = vadd.f32 %v1672, %v1744
  %v1819 = vadd.f32 %v1673, %v1813
  %v1820 = vadd.f32 %v1674, %v1815
  %v1821 = vxor.u32 %v1817, 2147483648
  %v1822 = vmul.f32 %v1821, 1.442695
  %v1823 = vpow.pop %v1822
  %v1824 = vadd.f32 %v1823, 1.0
  %v1825 = vrcp.pop %v1824
  %v1826 = vmul.f32 1.0, %v1825
  %v1827 = vxor.u32 %v1818, 2147483648
  %v1828 = vmul.f32 %v1827, 1.442695
  %v1829 = vpow.pop %v1828
  %v1830 = vadd.f32 %v1829, 1.0
  %v1831 = vrcp.pop %v1830
  %v1832 = vmul.f32 1.0, %v1831
  %v1833 = vxor.u32 %v1819, 2147483648
  %v1834 = vmul.f32 %v1833, 1.442695
  %v1835 = vpow.pop %v1834
  %v1836 = vadd.f32 %v1835, 1.0
  %v1837 = vrcp.pop %v1836
  %v1838 = vmul.f32 1.0, %v1837
  %v1839 = vtanh.pop %v1820
  %v1840 = vmul.f32 %v1832, %v1663
  %v1841 = vmul.f32 %v1826, %v1839
  %v1842 = vadd.f32 %v1840, %v1841
  %v1843 = vtanh.pop %v1842
  %v1844 = vmul.f32 %v1838, %v1843
  %s1845 = scalar_lea.vmem [#allocation3], 56
  %1846 = vst [vmem:[%s1845] sm:$0xff] %v1844
  %1847 = vst [vmem:[#allocation4] sm:$0xff] %v1844
  %1848 = vst [vmem:[#allocation5] sm:$0xff] %v1842
  %v1849 = vld [vmem:[#allocation3] sm:$0xff]
  %v1850 = vld [vmem:[#allocation3 + $0x8] sm:$0xff]
  %v1851 = vld [vmem:[#allocation3 + $0x10] sm:$0xff]
  %v1852 = vld [vmem:[#allocation3 + $0x18] sm:$0xff]
  %v1853 = vld [vmem:[#allocation3 + $0x20] sm:$0xff]
  %v1854 = vld [vmem:[#allocation3 + $0x28] sm:$0xff]
  %v1855 = vld [vmem:[#allocation3 + $0x30] sm:$0xff]
  %v1856 = vld [vmem:[#allocation3 + $0x38] sm:$0xff]
  %v1857 = vld [vmem:[%s4] sm:$0xff]
  %v1858 = vld [vmem:[%s4 + $0x8] sm:$0xff]
  %v1859 = vld [vmem:[%s4 + $0x10] sm:$0xff]
  %v1860 = vld [vmem:[%s4 + $0x18] sm:$0xff]
  %v1861 = vld [vmem:[%s4 + $0x20] sm:$0xff]
  %v1862 = vld [vmem:[%s4 + $0x28] sm:$0xff]
  %v1863 = vld [vmem:[%s4 + $0x30] sm:$0xff]
  %v1864 = vld [vmem:[%s4 + $0x38] sm:$0xff]
  %v1865 = vld [vmem:[%s4 + $0x40] sm:$0xff]
  %v1866 = vld [vmem:[%s4 + $0x48] sm:$0xff]
  %v1867 = vld [vmem:[%s4 + $0x50] sm:$0xff]
  %v1868 = vld [vmem:[%s4 + $0x58] sm:$0xff]
  %v1869 = vld [vmem:[%s4 + $0x60] sm:$0xff]
  %v1870 = vld [vmem:[%s4 + $0x68] sm:$0xff]
  %v1871 = vld [vmem:[%s4 + $0x70] sm:$0xff]
  %v1872 = vld [vmem:[%s4 + $0x78] sm:$0xff]
  %v1873 = vld [vmem:[%s5] sm:$0x1]
  %v1875 = vlaneseq
  %v1876 = vshrl.u32 %v1875, 7
  %v1877 = vsub.s32 0, %v1876
  %v1878 = vrot.slane %v1873, %v1877
  %1880 = vmatprep.subr.mxu0 0.0
  %1881 = vmatpush1.msra.mxu0 %v1857
  %1882 = vmatprep.subr.mxu0 0.0
  %1883 = vmatpush1.msra.mxu0 %v1858
  %1884 = vmatprep.subr.mxu0 0.0
  %1885 = vmatpush1.msra.mxu0 %v1859
  %1886 = vmatprep.subr.mxu0 0.0
  %1887 = vmatpush1.msra.mxu0 %v1860
  %1888 = vmatprep.subr.mxu0 0.0
  %1889 = vmatpush1.msra.mxu0 %v1861
  %1890 = vmatprep.subr.mxu0 0.0
  %1891 = vmatpush1.msra.mxu0 %v1862
  %1892 = vmatprep.subr.mxu0 0.0
  %1893 = vmatpush1.msra.mxu0 %v1863
  %1894 = vmatprep.subr.mxu0 0.0
  %1895 = vmatpush1.msra.mxu0 %v1864
  %1896 = vmatprep.subr.mxu0 0.0
  %1897 = vmatpush1.msra.mxu0 %v1865
  %1898 = vmatprep.subr.mxu0 0.0
  %1899 = vmatpush1.msra.mxu0 %v1866
  %1900 = vmatprep.subr.mxu0 0.0
  %1901 = vmatpush1.msra.mxu0 %v1867
  %1902 = vmatprep.subr.mxu0 0.0
  %1903 = vmatpush1.msra.mxu0 %v1868
  %1904 = vmatprep.subr.mxu0 0.0
  %1905 = vmatpush1.msra.mxu0 %v1869
  %1906 = vmatprep.subr.mxu0 0.0
  %1907 = vmatpush1.msra.mxu0 %v1870
  %1908 = vmatprep.subr.mxu0 0.0
  %1909 = vmatpush1.msra.mxu0 %v1871
  %1910 = vmatprep.subr.mxu0 0.0
  %1911 = vmatpush1.msra.mxu0 %v1872
  %1912 = vmatprep.subr.mxu0 0.0
  %1913 = vmatpush1.msra.mxu0 0.0
  %1914 = vmatprep.subr.mxu0 0.0
  %1915 = vmatpush1.msra.mxu0 0.0
  %1916 = vmatprep.subr.mxu0 0.0
  %1917 = vmatpush1.msra.mxu0 0.0
  %1918 = vmatprep.subr.mxu0 0.0
  %1919 = vmatpush1.msra.mxu0 0.0
  %1920 = vmatprep.subr.mxu0 0.0
  %1921 = vmatpush1.msra.mxu0 0.0
  %1922 = vmatprep.subr.mxu0 0.0
  %1923 = vmatpush1.msra.mxu0 0.0
  %1924 = vmatprep.subr.mxu0 0.0
  %1925 = vmatpush1.msra.mxu0 0.0
  %1926 = vmatprep.subr.mxu0 0.0
  %1927 = vmatpush1.msra.mxu0 0.0
  %1928 = vmatprep.subr.mxu0 0.0
  %1929 = vmatpush1.msra.mxu0 0.0
  %1930 = vmatprep.subr.mxu0 0.0
  %1931 = vmatpush1.msra.mxu0 0.0
  %1932 = vmatprep.subr.mxu0 0.0
  %1933 = vmatpush1.msra.mxu0 0.0
  %1934 = vmatprep.subr.mxu0 0.0
  %1935 = vmatpush1.msra.mxu0 0.0
  %1936 = vmatprep.subr.mxu0 0.0
  %1937 = vmatpush1.msra.mxu0 0.0
  %1938 = vmatprep.subr.mxu0 0.0
  %1939 = vmatpush1.msra.mxu0 0.0
  %1940 = vmatprep.subr.mxu0 0.0
  %1941 = vmatpush1.msra.mxu0 0.0
  %1942 = vmatprep.subr.mxu0 0.0
  %1943 = vmatpush1.msra.mxu0 0.0
  %1944 = vmatprep.mubr.f32.mxu0 0.0
  %1945 = vmatmul.mubr.f32.gmra.mrb[0].mxu0 %v1849
  %v1946 = vpop.f32.mrb[0].mxu0
  %v1947 = vadd.f32 %v1878, %v1946
  %v1948 = vpop.f32.mrb[0].mxu0
  %1949 = vmatprep.mubr.f32.mxu0 0.0
  %1950 = vmatmul.mubr.f32.gmra.mrb[0].mxu0 %v1850
  %v1951 = vpop.f32.mrb[0].mxu0
  %v1952 = vadd.f32 %v1878, %v1951
  %v1953 = vpop.f32.mrb[0].mxu0
  %1954 = vmatprep.mubr.f32.mxu0 0.0
  %1955 = vmatmul.mubr.f32.gmra.mrb[0].mxu0 %v1851
  %v1956 = vpop.f32.mrb[0].mxu0
  %v1957 = vadd.f32 %v1878, %v1956
  %v1958 = vpop.f32.mrb[0].mxu0
  %1959 = vmatprep.mubr.f32.mxu0 0.0
  %1960 = vmatmul.mubr.f32.gmra.mrb[0].mxu0 %v1852
  %v1961 = vpop.f32.mrb[0].mxu0
  %v1962 = vadd.f32 %v1878, %v1961
  %v1963 = vpop.f32.mrb[0].mxu0
  %1964 = vmatprep.mubr.f32.mxu0 0.0
  %1965 = vmatmul.mubr.f32.gmra.mrb[0].mxu0 %v1853
  %v1966 = vpop.f32.mrb[0].mxu0
  %v1967 = vadd.f32 %v1878, %v1966
  %v1968 = vpop.f32.mrb[0].mxu0
  %1969 = vmatprep.mubr.f32.mxu0 0.0
  %1970 = vmatmul.mubr.f32.gmra.mrb[0].mxu0 %v1854
  %v1971 = vpop.f32.mrb[0].mxu0
  %v1972 = vadd.f32 %v1878, %v1971
  %v1973 = vpop.f32.mrb[0].mxu0
  %1974 = vmatprep.mubr.f32.mxu0 0.0
  %1975 = vmatmul.mubr.f32.gmra.mrb[0].mxu0 %v1855
  %v1976 = vpop.f32.mrb[0].mxu0
  %v1977 = vadd.f32 %v1878, %v1976
  %v1978 = vpop.f32.mrb[0].mxu0
  %1979 = vmatprep.mubr.f32.mxu0 0.0
  %1980 = vmatmul.mubr.f32.gmra.mrb[0].mxu0 %v1856
  %v1981 = vpop.f32.mrb[0].mxu0
  %v1982 = vadd.f32 %v1878, %v1981
  %v1983 = vpop.f32.mrb[0].mxu0
  %1984 = vdwg.mxu0
  %1985 = vst [vmem:[%s6] sm:$0xff] %v1947
  %1986 = vst [vmem:[%s6 + $0x8] sm:$0xff] %v1952
  %1987 = vst [vmem:[%s6 + $0x10] sm:$0xff] %v1957
  %1988 = vst [vmem:[%s6 + $0x18] sm:$0xff] %v1962
  %1989 = vst [vmem:[%s6 + $0x20] sm:$0xff] %v1967
  %1990 = vst [vmem:[%s6 + $0x28] sm:$0xff] %v1972
  %1991 = vst [vmem:[%s6 + $0x30] sm:$0xff] %v1977
  %1992 = vst [vmem:[%s6 + $0x38] sm:$0xff] %v1982
  // Predicated region
  $region30: #{lstm_forward.1} parent=0 // pred_check
    _
  $region31: #{lstm_forward.1} parent=0 // pred_check_branch
    %1994 = sbr.rel (0) target = $region33
  $region32: #{lstm_forward.1} parent=0 // pred_region
    _
  $region33: #{lstm_forward.1} parent=0 // pred_fallthru
    _
  // Predicated region
  $region34: #{lstm_forward.1} parent=0 // pred_check
    _
  $region35: #{lstm_forward.1} parent=0 // pred_check_branch
    %1996 = sbr.rel (0) target = $region37
  $region36: #{lstm_forward.1} parent=0 // pred_region
    _
  $region37: #{lstm_forward.1} parent=0 // pred_fallthru
    _

</llo_original>
